<compile_context>
chip_gen: v6e
topology: v6e:2x2x1
jax: 0.10.0
libtpu: 0.0.40
codegen_flags: <defaults>
</compile_context>

<pallas_src>
import jax
import jax.numpy as jnp
from jax.experimental import pallas as pl
from jax.experimental.pallas import tpu as pltpu


_MAX_TILE = 512                      # adjacency tile edge (rows & reduction)
_FUSE_MAX_NODES = 1024               # single fused kernel when n_pad <= this
_VMEM_LIMIT = 64 * 1024 * 1024       # explicit scoped-VMEM limit


def _round_up(x, m):
    return ((x + m - 1) // m) * m


# ----------------------------------------------------------------------------
# Fused single-kernel path (whole graph resident in VMEM)
# ----------------------------------------------------------------------------
def _fused_kernel(adj_ref, pool_ref, x_ref,
                  w1_ref, b1_ref, w2_ref, b2_ref, w3_ref, b3_ref,
                  wc_ref, bc_ref, out_ref):
    adj = adj_ref[...]                                    # (n_pad, n_pad) bf16
    h = x_ref[...]                                        # (n_pad, f_pad) f32
    for w_ref, b_ref in ((w1_ref, b1_ref), (w2_ref, b2_ref), (w3_ref, b3_ref)):
        xw = jnp.dot(h.astype(jnp.float32), w_ref[...],
                     preferred_element_type=jnp.float32).astype(jnp.bfloat16)
        h = jnp.maximum(
            jnp.dot(adj, xw, preferred_element_type=jnp.float32) + b_ref[...],
            0.0).astype(jnp.bfloat16)
    pooled = jnp.dot(pool_ref[...], h, preferred_element_type=jnp.float32)
    out_ref[...] = jnp.dot(pooled, wc_ref[...],
                           preferred_element_type=jnp.float32) + bc_ref[...]


def _fused_forward(adj_bf16, pool_bf16, x_p, weights):
    (w1p, b1p, w2p, b2p, w3p, b3p, wcp, bcp) = weights
    g_pad = pool_bf16.shape[0]
    c_pad = wcp.shape[1]
    return pl.pallas_call(
        _fused_kernel,
        out_shape=jax.ShapeDtypeStruct((g_pad, c_pad), jnp.float32),
        compiler_params=pltpu.CompilerParams(vmem_limit_bytes=_VMEM_LIMIT),
    )(adj_bf16, pool_bf16, x_p, w1p, b1p, w2p, b2p, w3p, b3p, wcp, bcp)


# ----------------------------------------------------------------------------
# Kernel 1 (tiled path): feature transform  XW = H @ W   (row-tiled)
# ----------------------------------------------------------------------------
def _linear_kernel(x_ref, w_ref, out_ref):
    out_ref[...] = jnp.dot(
        x_ref[...].astype(jnp.float32), w_ref[...],
        preferred_element_type=jnp.float32).astype(out_ref.dtype)


def _linear(x, w, tm):
    n_pad, k = x.shape
    f_out = w.shape[1]
    grid = (n_pad // tm,)
    return pl.pallas_call(
        _linear_kernel,
        out_shape=jax.ShapeDtypeStruct((n_pad, f_out), jnp.bfloat16),
        grid_spec=pltpu.PrefetchScalarGridSpec(
            num_scalar_prefetch=0,
            grid=grid,
            in_specs=[pl.BlockSpec((tm, k), lambda i: (i, 0)),
                      pl.BlockSpec((k, f_out), lambda i: (0, 0))],
            out_specs=pl.BlockSpec((tm, f_out), lambda i: (i, 0))),
        compiler_params=pltpu.CompilerParams(
            dimension_semantics=("parallel",),
            vmem_limit_bytes=_VMEM_LIMIT),
        cost_estimate=pl.CostEstimate(
            flops=2 * n_pad * k * f_out,
            transcendentals=0,
            bytes_accessed=int(x.size * x.dtype.itemsize
                               + w.size * 4 + n_pad * f_out * 2)),
    )(x, w)


# ----------------------------------------------------------------------------
# Kernel 2 (tiled path): aggregation  H' = relu(A_hat @ XW + b)
# ----------------------------------------------------------------------------
def _aggregate_kernel(mask_ref, adj_ref, xw_ref, b_ref, out_ref, acc_ref):
    i = pl.program_id(0)
    k = pl.program_id(1)
    nk = pl.num_programs(1)

    @pl.when(k == 0)
    def _():
        acc_ref[...] = jnp.zeros_like(acc_ref)

    # skip the MXU pass for all-zero adjacency tiles (block-sparse skip)
    @pl.when(mask_ref[i * nk + k] != 0)
    def _():
        acc_ref[...] += jnp.dot(adj_ref[...], xw_ref[...],
                                preferred_element_type=jnp.float32)

    @pl.when(k == nk - 1)
    def _():
        out_ref[...] = jnp.maximum(acc_ref[...] + b_ref[...],
                                   0.0).astype(out_ref.dtype)


def _aggregate(adj_bf16, xw, b, block_mask, tm, tk):
    n_pad = adj_bf16.shape[0]
    f_out = xw.shape[1]
    nb, kb = n_pad // tm, n_pad // tk
    return pl.pallas_call(
        _aggregate_kernel,
        out_shape=jax.ShapeDtypeStruct((n_pad, f_out), jnp.bfloat16),
        grid_spec=pltpu.PrefetchScalarGridSpec(
            num_scalar_prefetch=1,
            grid=(nb, kb),
            in_specs=[pl.BlockSpec((tm, tk), lambda i, k, m: (i, k)),
                      pl.BlockSpec((tk, f_out), lambda i, k, m: (k, 0)),
                      pl.BlockSpec((1, f_out), lambda i, k, m: (0, 0))],
            out_specs=pl.BlockSpec((tm, f_out), lambda i, k, m: (i, 0)),
            scratch_shapes=[pltpu.VMEM((tm, f_out), jnp.float32)]),
        compiler_params=pltpu.CompilerParams(
            dimension_semantics=("parallel", "arbitrary"),
            vmem_limit_bytes=_VMEM_LIMIT),
        cost_estimate=pl.CostEstimate(
            flops=2 * n_pad * n_pad * f_out,
            transcendentals=0,
            bytes_accessed=int(adj_bf16.size * 2 + xw.size * 2
                               + n_pad * f_out * 2)),
    )(block_mask, adj_bf16, xw, b)


# ----------------------------------------------------------------------------
# Kernel 3 (tiled path): global mean pool + classifier
# ----------------------------------------------------------------------------
def _pool_classify_kernel(pool_ref, h_ref, wc_ref, bc_ref, out_ref, acc_ref):
    k = pl.program_id(0)

    @pl.when(k == 0)
    def _():
        acc_ref[...] = jnp.zeros_like(acc_ref)

    acc_ref[...] += jnp.dot(pool_ref[...], h_ref[...],
                            preferred_element_type=jnp.float32)

    @pl.when(k == pl.num_programs(0) - 1)
    def _():
        out_ref[...] = jnp.dot(acc_ref[...], wc_ref[...],
                               preferred_element_type=jnp.float32) + bc_ref[...]


def _pool_classify(pool_bf16, h, wc, bc, tk):
    g_pad, n_pad = pool_bf16.shape
    h_pad = h.shape[1]
    c_pad = wc.shape[1]
    kb = n_pad // tk
    return pl.pallas_call(
        _pool_classify_kernel,
        out_shape=jax.ShapeDtypeStruct((g_pad, c_pad), jnp.float32),
        grid_spec=pltpu.PrefetchScalarGridSpec(
            num_scalar_prefetch=0,
            grid=(kb,),
            in_specs=[pl.BlockSpec((g_pad, tk), lambda k: (0, k)),
                      pl.BlockSpec((tk, h_pad), lambda k: (k, 0)),
                      pl.BlockSpec((h_pad, c_pad), lambda k: (0, 0)),
                      pl.BlockSpec((1, c_pad), lambda k: (0, 0))],
            out_specs=pl.BlockSpec((g_pad, c_pad), lambda k: (0, 0)),
            scratch_shapes=[pltpu.VMEM((g_pad, h_pad), jnp.float32)]),
        compiler_params=pltpu.CompilerParams(
            dimension_semantics=("arbitrary",),
            vmem_limit_bytes=_VMEM_LIMIT),
    )(pool_bf16, h, wc, bc)


# ----------------------------------------------------------------------------
# Plain-JAX graph preprocessing glue
# ----------------------------------------------------------------------------
def gcn_normalized_adj(edge_index, num_nodes):
    """Dense D^-1/2 (A + I) D^-1/2 as used by PyG GCNConv (edge weight = 1)."""
    src, dst = edge_index[0], edge_index[1]
    a = jnp.zeros((num_nodes, num_nodes), jnp.float32)
    # message flows src -> dst; duplicate edges are summed (PyG semantics)
    a = a.at[dst, src].add(1.0)
    a = a + jnp.eye(num_nodes, dtype=jnp.float32)          # self-loops
    deg = jnp.sum(a, axis=1)
    dinv = jnp.where(deg > 0, 1.0 / jnp.sqrt(deg), 0.0)
    return dinv[:, None] * a * dinv[None, :]


def mean_pool_matrix(batch, num_graphs, num_nodes):
    onehot = (batch[None, :] == jnp.arange(num_graphs)[:, None]).astype(jnp.float32)
    counts = jnp.maximum(onehot.sum(axis=1, keepdims=True), 1.0)
    return onehot / counts


# ----------------------------------------------------------------------------
# Full forward
# ----------------------------------------------------------------------------
def malware_gnn_forward(x, edge_index, batch, params, num_graphs):
    (w1, b1, w2, b2, w3, b3, wc, bc) = params
    n, f = x.shape
    hidden = w1.shape[1]
    n_classes = wc.shape[1]

    # ---- padding plan (lane-dense) ----
    f_pad = _round_up(f, 128)
    h_pad = _round_up(hidden, 128)
    c_pad = _round_up(n_classes, 128)
    g_pad = _round_up(num_graphs, 8)

    use_fused = n <= _FUSE_MAX_NODES
    if use_fused:
        n_pad = _round_up(n, 128)
        tm = tk = n_pad
    else:
        n_pad = _round_up(n, _MAX_TILE)
        tm = tk = _MAX_TILE

    # ---- graph preprocessing ----
    adj = gcn_normalized_adj(edge_index, n)                 # (n, n)   f32
    pool = mean_pool_matrix(batch, num_graphs, n)           # (g, n)   f32

    adj_p = jnp.zeros((n_pad, n_pad), jnp.float32).at[:n, :n].set(adj)
    pool_p = jnp.zeros((g_pad, n_pad), jnp.float32).at[:num_graphs, :n].set(pool)

    adj_bf16 = adj_p.astype(jnp.bfloat16)
    pool_bf16 = pool_p.astype(jnp.bfloat16)

    x_p = jnp.zeros((n_pad, f_pad), jnp.float32).at[:n, :f].set(x)

    def pad_w(w, rows, cols):
        return jnp.zeros((rows, cols), jnp.float32).at[:w.shape[0], :w.shape[1]].set(w)

    def pad_b(b, cols):
        b2d = b.reshape(1, -1)
        return jnp.zeros((1, cols), jnp.float32).at[:, :b2d.shape[1]].set(b2d)

    w1p, b1p = pad_w(w1, f_pad, h_pad), pad_b(b1, h_pad)
    w2p, b2p = pad_w(w2, h_pad, h_pad), pad_b(b2, h_pad)
    w3p, b3p = pad_w(w3, h_pad, h_pad), pad_b(b3, h_pad)
    wcp, bcp = pad_w(wc, h_pad, c_pad), pad_b(bc, c_pad)

    if use_fused:
        logits_full = _fused_forward(
            adj_bf16, pool_bf16, x_p,
            (w1p, b1p, w2p, b2p, w3p, b3p, wcp, bcp))       # (g_pad, c_pad)
        return logits_full[:num_graphs, :n_classes]

    # ---- tiled path for large graphs ----
    # block-nonzero mask over adjacency tiles (scalar-prefetched into SMEM)
    nb, kb = n_pad // tm, n_pad // tk
    blk = adj_p.reshape(nb, tm, kb, tk)
    block_mask = (jnp.sum(jnp.abs(blk), axis=(1, 3)) > 0).astype(jnp.int32).reshape(-1)

    # 3x GCN layer: relu(A_hat @ (H @ W) + b)
    h = x_p
    for wp, bp in ((w1p, b1p), (w2p, b2p), (w3p, b3p)):
        xw = _linear(h, wp, tm)                               # (n_pad, h_pad) bf16
        h = _aggregate(adj_bf16, xw, bp, block_mask, tm, tk)  # (n_pad, h_pad) bf16

    # global mean pool + classifier
    logits_full = _pool_classify(pool_bf16, h, wcp, bcp, tk)  # (g_pad, c_pad) f32
    return logits_full[:num_graphs, :n_classes]


# ----------------------------------------------------------------------------
# Reference forward (plain JAX, f32) for a sanity check
# ----------------------------------------------------------------------------
def reference_forward(x, edge_index, batch, params, num_graphs):
    (w1, b1, w2, b2, w3, b3, wc, bc) = params
    adj = gcn_normalized_adj(edge_index, x.shape[0])
    pool = mean_pool_matrix(batch, num_graphs, x.shape[0])
    h = x
    for w, b in ((w1, b1), (w2, b2), (w3, b3)):
        h = jnp.maximum(adj @ (h @ w) + b, 0.0)
    return pool @ h @ wc + bc


def init_params(key, num_features, hidden_dim=64, num_classes=2):
    ks = jax.random.split(key, 8)

    def lin(k, fan_in, fan_out):
        bound = 1.0 / jnp.sqrt(fan_in)
        return jax.random.uniform(k, (fan_in, fan_out), jnp.float32,
                                  minval=-bound, maxval=bound)

    w1 = lin(ks[0], num_features, hidden_dim)
    b1 = jnp.zeros((1, hidden_dim), jnp.float32)
    w2 = lin(ks[1], hidden_dim, hidden_dim)
    b2 = jnp.zeros((1, hidden_dim), jnp.float32)
    w3 = lin(ks[2], hidden_dim, hidden_dim)
    b3 = jnp.zeros((1, hidden_dim), jnp.float32)
    wc = lin(ks[3], hidden_dim, num_classes)
    bc = jax.random.uniform(ks[4], (1, num_classes), jnp.float32,
                            minval=-1.0 / jnp.sqrt(hidden_dim),
                            maxval=1.0 / jnp.sqrt(hidden_dim))
    return (w1, b1, w2, b2, w3, b3, wc, bc)


def _ring_graphs(num_graphs, nodes_per_graph):
    src_list, dst_list = [], []
    for g in range(num_graphs):
        base = g * nodes_per_graph
        for i in range(nodes_per_graph):
            a = base + i
            b = base + (i + 1) % nodes_per_graph
            src_list += [a, b]
            dst_list += [b, a]
    edge_index = jnp.array([src_list, dst_list], dtype=jnp.int32)
    batch = jnp.repeat(jnp.arange(num_graphs, dtype=jnp.int32), nodes_per_graph)
    return edge_index, batch


if __name__ == "__main__":
    key = jax.random.PRNGKey(0)
    k_x, k_p, k_x2 = jax.random.split(key, 3)

    num_features = 8
    hidden_dim = 64          # module default
    params = init_params(k_p, num_features, hidden_dim, num_classes=2)

    # ---- test 1: small graphs -> fused single-kernel path ----
    num_graphs = 2
    nodes_per_graph = 8
    num_nodes = num_graphs * nodes_per_graph
    x = jax.random.normal(k_x, (num_nodes, num_features), jnp.float32)
    edge_index, batch = _ring_graphs(num_graphs, nodes_per_graph)

    logits = malware_gnn_forward(x, edge_index, batch, params, num_graphs)
    jax.block_until_ready(logits)
    assert logits.shape == (num_graphs, 2)
    assert bool(jnp.all(jnp.isfinite(logits)))

    ref = reference_forward(x, edge_index, batch, params, num_graphs)
    max_err = float(jnp.max(jnp.abs(logits - ref)))
    assert max_err < 0.2, f"fused path: max abs error vs reference: {max_err}"

    # ---- test 2: large graphs -> tiled multi-kernel path (3x3 grid) ----
    num_graphs2 = 2
    nodes_per_graph2 = 600                 # n = 1200 > 1024 -> tiled path
    num_nodes2 = num_graphs2 * nodes_per_graph2
    x2 = jax.random.normal(k_x2, (num_nodes2, num_features), jnp.float32)
    edge_index2, batch2 = _ring_graphs(num_graphs2, nodes_per_graph2)

    logits2 = malware_gnn_forward(x2, edge_index2, batch2, params, num_graphs2)
    jax.block_until_ready(logits2)
    assert logits2.shape == (num_graphs2, 2)
    assert bool(jnp.all(jnp.isfinite(logits2)))

    ref2 = reference_forward(x2, edge_index2, batch2, params, num_graphs2)
    max_err2 = float(jnp.max(jnp.abs(logits2 - ref2)))
    assert max_err2 < 0.2, f"tiled path: max abs error vs reference: {max_err2}"

    print("KERNEL_OK")
</pallas_src>

<mosaic_0001>
module attributes {stable_mosaic.version = 11 : i64} {
  func.func @_fused_kernel(%arg0: memref<128x128xbf16, #tpu.memory_space<vmem>>, %arg1: memref<8x128xbf16, #tpu.memory_space<vmem>>, %arg2: memref<128x128xf32, #tpu.memory_space<vmem>>, %arg3: memref<128x128xf32, #tpu.memory_space<vmem>>, %arg4: memref<1x128xf32, #tpu.memory_space<vmem>>, %arg5: memref<128x128xf32, #tpu.memory_space<vmem>>, %arg6: memref<1x128xf32, #tpu.memory_space<vmem>>, %arg7: memref<128x128xf32, #tpu.memory_space<vmem>>, %arg8: memref<1x128xf32, #tpu.memory_space<vmem>>, %arg9: memref<128x128xf32, #tpu.memory_space<vmem>>, %arg10: memref<1x128xf32, #tpu.memory_space<vmem>>, %arg11: memref<8x128xf32, #tpu.memory_space<vmem>>) attributes {dimension_semantics = [], scalar_prefetch = 0 : i64, scratch_operands = 0 : i64, tpu.core_type = #tpu.core_type<tc>} {
    %c0 = arith.constant 0 : index
    %c0_0 = arith.constant 0 : index
    %0 = vector.load %arg0[%c0, %c0_0] : memref<128x128xbf16, #tpu.memory_space<vmem>>, vector<128x128xbf16>
    %c0_1 = arith.constant 0 : index
    %c0_2 = arith.constant 0 : index
    %1 = vector.load %arg2[%c0_1, %c0_2] : memref<128x128xf32, #tpu.memory_space<vmem>>, vector<128x128xf32>
    %c0_3 = arith.constant 0 : index
    %c0_4 = arith.constant 0 : index
    %2 = vector.load %arg3[%c0_3, %c0_4] : memref<128x128xf32, #tpu.memory_space<vmem>>, vector<128x128xf32>
    %cst = arith.constant dense<0.000000e+00> : vector<128x128xf32>
    %3 = tpu.matmul %1, %2, %cst {dimension_numbers = #tpu.dot_dimension_numbers<[1], [0], [0], [1], [0, 0, 1, 1], [], []>} : vector<128x128xf32>, vector<128x128xf32>, vector<128x128xf32> -> vector<128x128xf32>
    %4 = arith.truncf %3 : vector<128x128xf32> to vector<128x128xbf16>
    %cst_5 = arith.constant dense<0.000000e+00> : vector<128x128xf32>
    %5 = tpu.matmul %0, %4, %cst_5 {dimension_numbers = #tpu.dot_dimension_numbers<[1], [0], [0], [1], [0, 0, 1, 1], [], []>} : vector<128x128xbf16>, vector<128x128xbf16>, vector<128x128xf32> -> vector<128x128xf32>
    %c0_6 = arith.constant 0 : index
    %c0_7 = arith.constant 0 : index
    %6 = vector.load %arg4[%c0_6, %c0_7] : memref<1x128xf32, #tpu.memory_space<vmem>>, vector<1x128xf32>
    %7 = vector.broadcast %6 : vector<1x128xf32> to vector<128x128xf32>
    %8 = arith.addf %5, %7 : vector<128x128xf32>
    %cst_8 = arith.constant 0.000000e+00 : f32
    %9 = vector.broadcast %cst_8 : f32 to vector<128x128xf32>
    %10 = arith.maximumf %8, %9 : vector<128x128xf32>
    %11 = arith.truncf %10 : vector<128x128xf32> to vector<128x128xbf16>
    %12 = arith.extf %11 : vector<128x128xbf16> to vector<128x128xf32>
    %c0_9 = arith.constant 0 : index
    %c0_10 = arith.constant 0 : index
    %13 = vector.load %arg5[%c0_9, %c0_10] : memref<128x128xf32, #tpu.memory_space<vmem>>, vector<128x128xf32>
    %cst_11 = arith.constant dense<0.000000e+00> : vector<128x128xf32>
    %14 = tpu.matmul %12, %13, %cst_11 {dimension_numbers = #tpu.dot_dimension_numbers<[1], [0], [0], [1], [0, 0, 1, 1], [], []>} : vector<128x128xf32>, vector<128x128xf32>, vector<128x128xf32> -> vector<128x128xf32>
    %15 = arith.truncf %14 : vector<128x128xf32> to vector<128x128xbf16>
    %cst_12 = arith.constant dense<0.000000e+00> : vector<128x128xf32>
    %16 = tpu.matmul %0, %15, %cst_12 {dimension_numbers = #tpu.dot_dimension_numbers<[1], [0], [0], [1], [0, 0, 1, 1], [], []>} : vector<128x128xbf16>, vector<128x128xbf16>, vector<128x128xf32> -> vector<128x128xf32>
    %c0_13 = arith.constant 0 : index
    %c0_14 = arith.constant 0 : index
    %17 = vector.load %arg6[%c0_13, %c0_14] : memref<1x128xf32, #tpu.memory_space<vmem>>, vector<1x128xf32>
    %18 = vector.broadcast %17 : vector<1x128xf32> to vector<128x128xf32>
    %19 = arith.addf %16, %18 : vector<128x128xf32>
    %cst_15 = arith.constant 0.000000e+00 : f32
    %20 = vector.broadcast %cst_15 : f32 to vector<128x128xf32>
    %21 = arith.maximumf %19, %20 : vector<128x128xf32>
    %22 = arith.truncf %21 : vector<128x128xf32> to vector<128x128xbf16>
    %23 = arith.extf %22 : vector<128x128xbf16> to vector<128x128xf32>
    %c0_16 = arith.constant 0 : index
    %c0_17 = arith.constant 0 : index
    %24 = vector.load %arg7[%c0_16, %c0_17] : memref<128x128xf32, #tpu.memory_space<vmem>>, vector<128x128xf32>
    %cst_18 = arith.constant dense<0.000000e+00> : vector<128x128xf32>
    %25 = tpu.matmul %23, %24, %cst_18 {dimension_numbers = #tpu.dot_dimension_numbers<[1], [0], [0], [1], [0, 0, 1, 1], [], []>} : vector<128x128xf32>, vector<128x128xf32>, vector<128x128xf32> -> vector<128x128xf32>
    %26 = arith.truncf %25 : vector<128x128xf32> to vector<128x128xbf16>
    %cst_19 = arith.constant dense<0.000000e+00> : vector<128x128xf32>
    %27 = tpu.matmul %0, %26, %cst_19 {dimension_numbers = #tpu.dot_dimension_numbers<[1], [0], [0], [1], [0, 0, 1, 1], [], []>} : vector<128x128xbf16>, vector<128x128xbf16>, vector<128x128xf32> -> vector<128x128xf32>
    %c0_20 = arith.constant 0 : index
    %c0_21 = arith.constant 0 : index
    %28 = vector.load %arg8[%c0_20, %c0_21] : memref<1x128xf32, #tpu.memory_space<vmem>>, vector<1x128xf32>
    %29 = vector.broadcast %28 : vector<1x128xf32> to vector<128x128xf32>
    %30 = arith.addf %27, %29 : vector<128x128xf32>
    %cst_22 = arith.constant 0.000000e+00 : f32
    %31 = vector.broadcast %cst_22 : f32 to vector<128x128xf32>
    %32 = arith.maximumf %30, %31 : vector<128x128xf32>
    %33 = arith.truncf %32 : vector<128x128xf32> to vector<128x128xbf16>
    %c0_23 = arith.constant 0 : index
    %c0_24 = arith.constant 0 : index
    %34 = vector.load %arg1[%c0_23, %c0_24] : memref<8x128xbf16, #tpu.memory_space<vmem>>, vector<8x128xbf16>
    %cst_25 = arith.constant dense<0.000000e+00> : vector<8x128xf32>
    %35 = tpu.matmul %34, %33, %cst_25 {dimension_numbers = #tpu.dot_dimension_numbers<[1], [0], [0], [1], [0, 0, 1, 1], [], []>} : vector<8x128xbf16>, vector<128x128xbf16>, vector<8x128xf32> -> vector<8x128xf32>
    %c0_26 = arith.constant 0 : index
    %c0_27 = arith.constant 0 : index
    %36 = vector.load %arg9[%c0_26, %c0_27] : memref<128x128xf32, #tpu.memory_space<vmem>>, vector<128x128xf32>
    %cst_28 = arith.constant dense<0.000000e+00> : vector<8x128xf32>
    %37 = tpu.matmul %35, %36, %cst_28 {dimension_numbers = #tpu.dot_dimension_numbers<[1], [0], [0], [1], [0, 0, 1, 1], [], []>} : vector<8x128xf32>, vector<128x128xf32>, vector<8x128xf32> -> vector<8x128xf32>
    %c0_29 = arith.constant 0 : index
    %c0_30 = arith.constant 0 : index
    %38 = vector.load %arg10[%c0_29, %c0_30] : memref<1x128xf32, #tpu.memory_space<vmem>>, vector<1x128xf32>
    %39 = vector.broadcast %38 : vector<1x128xf32> to vector<8x128xf32>
    %40 = arith.addf %37, %39 : vector<8x128xf32>
    %c0_31 = arith.constant 0 : index
    %c0_32 = arith.constant 0 : index
    %41 = vector.load %arg11[%c0_31, %c0_32] : memref<8x128xf32, #tpu.memory_space<vmem>>, vector<8x128xf32>
    tpu.vector_store %arg11[%c0_31, %c0_32], %40 {strides = array<i32>} : memref<8x128xf32, #tpu.memory_space<vmem>>, vector<8x128xf32>,
    return
  }
}

</mosaic_0001>

<llo_original>
// kernel: tpu_custom_call.1
$region0: #{tpu_custom_call.1}
  #allocation0 [shape = 'u32[]', space=smem, size = 0x4, offset = 0x4, fixed_abs, tag = 'smem constant byte address 0x4 - core index']
  #allocation1 [shape = 'u32[144,128]{1,0:T(1,128)}', space=vmem, size = 0x12000, scoped, tag = 'internal scratch']
  %s0 = inlined_call_operand.hbm [shape: bf16[128,128], index: 0, kind: input, shape index: {}]
  %s1 = inlined_call_operand.hbm [shape: bf16[8,128], index: 1, kind: input, shape index: {}]
  %s2 = inlined_call_operand.hbm [shape: f32[128,128], index: 2, kind: input, shape index: {}]
  %s3 = inlined_call_operand.hbm [shape: f32[128,128], index: 3, kind: input, shape index: {}]
  %s4 = inlined_call_operand.vmem [shape: f32[1,128], index: 4, kind: input, shape index: {}]
  %s5 = inlined_call_operand.hbm [shape: f32[128,128], index: 5, kind: input, shape index: {}]
  %s6 = inlined_call_operand.vmem [shape: f32[1,128], index: 6, kind: input, shape index: {}]
  %s7 = inlined_call_operand.hbm [shape: f32[128,128], index: 7, kind: input, shape index: {}]
  %s8 = inlined_call_operand.vmem [shape: f32[1,128], index: 8, kind: input, shape index: {}]
  %s9 = inlined_call_operand.hbm [shape: f32[128,128], index: 9, kind: input, shape index: {}]
  %s10 = inlined_call_operand.vmem [shape: f32[1,128], index: 10, kind: input, shape index: {}]
  %s11 = inlined_call_operand.hbm [shape: f32[8,128], index: 11, kind: output, shape index: {}]
  %s12 = sld [smem:[#allocation0]]
  $region82: #{tpu_custom_call.1} parent=0
    _
  %s14 = ssub.s32 1, %s12
  %s15 = scalar_select 0, %s14, %s12
  $region1: #{tpu_custom_call.1} parent=0
    #allocation2 [shape = 'u8[32768]{0}', space=vmem, size = 0x8000, scoped, tag = 'input window, operand 0, single buffered']
    #allocation3 [shape = 's32[1]{0}', space=sflag, size = 0x4, scoped, tag = 'scoped memory for tpu_custom_call.1']
    #allocation4 [shape = 's32[1]{0}', space=sflag, size = 0x4, scoped, tag = 'scoped memory for tpu_custom_call.1']
    #allocation5 [shape = 'u8[2048]{0}', space=vmem, size = 0x800, scoped, tag = 'input window, operand 1, single buffered']
    #allocation6 [shape = 's32[1]{0}', space=sflag, size = 0x4, scoped, tag = 'scoped memory for tpu_custom_call.1']
    #allocation7 [shape = 'u8[65536]{0}', space=vmem, size = 0x10000, scoped, tag = 'input window, operand 2, single buffered']
    #allocation8 [shape = 'u8[65536]{0}', space=vmem, size = 0x10000, scoped, tag = 'input window, operand 3, single buffered']
    #allocation9 [shape = 's32[1]{0}', space=sflag, size = 0x4, scoped, tag = 'scoped memory for tpu_custom_call.1']
    #allocation10 [shape = 'u8[65536]{0}', space=vmem, size = 0x10000, scoped, tag = 'input window, operand 5, single buffered']
    #allocation11 [shape = 'u8[65536]{0}', space=vmem, size = 0x10000, scoped, tag = 'input window, operand 7, single buffered']
    #allocation12 [shape = 's32[1]{0}', space=sflag, size = 0x4, scoped, tag = 'scoped memory for tpu_custom_call.1']
    #allocation13 [shape = 'u8[65536]{0}', space=vmem, size = 0x10000, scoped, tag = 'input window, operand 9, single buffered']
    #allocation14 [shape = 'u8[4096]{0}', space=vmem, size = 0x1000, scoped, tag = 'output window, operand 0, single buffered']
    %16 = vsyncpa [#allocation3], 0
    %17 = vsyncpa [#allocation6], 0
    %18 = vsyncpa [#allocation9], 0
    %19 = vsyncpa [#allocation12], 0
    %20 = vsyncpa [#allocation4], 0
    // Predicated region
    $region2: #{tpu_custom_call.1} parent=1 // pred_check
      _
    $region3: #{tpu_custom_call.1} parent=1 // pred_check_branch
      %22 = sbr.rel (0) target = $region5
    $region4: #{tpu_custom_call.1} parent=1 // pred_region
      %s24 = ssub.s32 1024, 1024
      %25 = vsyncadd [#allocation3], %s24
      %s26 = sshll.u32 [#allocation2], 4
      %s27 = int_to_ptr.vmem [resolvable:$true] %s26
      %32 = dma.hbm_to_vmem [thread:$0]  %s0, 1024, %s27, [#allocation3], 64, 64, 4
    $region5: #{tpu_custom_call.1} parent=1 // pred_fallthru
      _
    // Predicated region
    $region6: #{tpu_custom_call.1} parent=1 // pred_check
      _
    $region7: #{tpu_custom_call.1} parent=1 // pred_check_branch
      %34 = sbr.rel (0) target = $region9
    $region8: #{tpu_custom_call.1} parent=1 // pred_region
      %s36 = ssub.s32 64, 64
      %37 = vsyncadd [#allocation6], %s36
      %s39 = sshll.u32 [#allocation5], 4
      %s40 = int_to_ptr.vmem [resolvable:$true] %s39
      %42 = dma.hbm_to_vmem [thread:$0]  %s1, 64, %s40, [#allocation6]
    $region9: #{tpu_custom_call.1} parent=1 // pred_fallthru
      _
    // Predicated region
    $region10: #{tpu_custom_call.1} parent=1 // pred_check
      _
    $region11: #{tpu_custom_call.1} parent=1 // pred_check_branch
      %44 = sbr.rel (0) target = $region13
    $region12: #{tpu_custom_call.1} parent=1 // pred_region
      %s46 = ssub.s32 2048, 2048
      %47 = vsyncadd [#allocation6], %s46
      %s48 = sshll.u32 [#allocation7], 4
      %s49 = int_to_ptr.vmem [resolvable:$true] %s48
      %54 = dma.hbm_to_vmem [thread:$0]  %s2, 2048, %s49, [#allocation6], 128, 128, 8
    $region13: #{tpu_custom_call.1} parent=1 // pred_fallthru
      _
    // Predicated region
    $region14: #{tpu_custom_call.1} parent=1 // pred_check
      _
    $region15: #{tpu_custom_call.1} parent=1 // pred_check_branch
      %56 = sbr.rel (0) target = $region17
    $region16: #{tpu_custom_call.1} parent=1 // pred_region
      %s58 = ssub.s32 2048, 2048
      %59 = vsyncadd [#allocation9], %s58
      %s60 = sshll.u32 [#allocation8], 4
      %s61 = int_to_ptr.vmem [resolvable:$true] %s60
      %66 = dma.hbm_to_vmem [thread:$0]  %s3, 2048, %s61, [#allocation9], 128, 128, 8
    $region17: #{tpu_custom_call.1} parent=1 // pred_fallthru
      _
    // Predicated region
    $region18: #{tpu_custom_call.1} parent=1 // pred_check
      _
    $region19: #{tpu_custom_call.1} parent=1 // pred_check_branch
      %68 = sbr.rel (0) target = $region21
    $region20: #{tpu_custom_call.1} parent=1 // pred_region
      _
    $region21: #{tpu_custom_call.1} parent=1 // pred_fallthru
      _
    // Predicated region
    $region22: #{tpu_custom_call.1} parent=1 // pred_check
      _
    $region23: #{tpu_custom_call.1} parent=1 // pred_check_branch
      %70 = sbr.rel (0) target = $region25
    $region24: #{tpu_custom_call.1} parent=1 // pred_region
      %s72 = ssub.s32 2048, 2048
      %73 = vsyncadd [#allocation9], %s72
      %s74 = sshll.u32 [#allocation10], 4
      %s75 = int_to_ptr.vmem [resolvable:$true] %s74
      %80 = dma.hbm_to_vmem [thread:$0]  %s5, 2048, %s75, [#allocation9], 128, 128, 8
    $region25: #{tpu_custom_call.1} parent=1 // pred_fallthru
      _
    // Predicated region
    $region26: #{tpu_custom_call.1} parent=1 // pred_check
      _
    $region27: #{tpu_custom_call.1} parent=1 // pred_check_branch
      %82 = sbr.rel (0) target = $region29
    $region28: #{tpu_custom_call.1} parent=1 // pred_region
      _
    $region29: #{tpu_custom_call.1} parent=1 // pred_fallthru
      _
    // Predicated region
    $region30: #{tpu_custom_call.1} parent=1 // pred_check
      _
    $region31: #{tpu_custom_call.1} parent=1 // pred_check_branch
      %84 = sbr.rel (0) target = $region33
    $region32: #{tpu_custom_call.1} parent=1 // pred_region
      %s86 = ssub.s32 2048, 2048
      %87 = vsyncadd [#allocation12], %s86
      %s88 = sshll.u32 [#allocation11], 4
      %s89 = int_to_ptr.vmem [resolvable:$true] %s88
      %94 = dma.hbm_to_vmem [thread:$0]  %s7, 2048, %s89, [#allocation12], 128, 128, 8
    $region33: #{tpu_custom_call.1} parent=1 // pred_fallthru
      _
    // Predicated region
    $region34: #{tpu_custom_call.1} parent=1 // pred_check
      _
    $region35: #{tpu_custom_call.1} parent=1 // pred_check_branch
      %96 = sbr.rel (0) target = $region37
    $region36: #{tpu_custom_call.1} parent=1 // pred_region
      _
    $region37: #{tpu_custom_call.1} parent=1 // pred_fallthru
      _
    // Predicated region
    $region38: #{tpu_custom_call.1} parent=1 // pred_check
      _
    $region39: #{tpu_custom_call.1} parent=1 // pred_check_branch
      %98 = sbr.rel (0) target = $region41
    $region40: #{tpu_custom_call.1} parent=1 // pred_region
      %s100 = ssub.s32 2048, 2048
      %101 = vsyncadd [#allocation12], %s100
      %s102 = sshll.u32 [#allocation13], 4
      %s103 = int_to_ptr.vmem [resolvable:$true] %s102
      %108 = dma.hbm_to_vmem [thread:$0]  %s9, 2048, %s103, [#allocation12], 128, 128, 8
    $region41: #{tpu_custom_call.1} parent=1 // pred_fallthru
      _
    // Predicated region
    $region42: #{tpu_custom_call.1} parent=1 // pred_check
      _
    $region43: #{tpu_custom_call.1} parent=1 // pred_check_branch
      %110 = sbr.rel (0) target = $region45
    $region44: #{tpu_custom_call.1} parent=1 // pred_region
      _
    $region45: #{tpu_custom_call.1} parent=1 // pred_fallthru
      _
    // Predicated region
    $region46: #{tpu_custom_call.1} parent=1 // pred_check
      _
    $region47: #{tpu_custom_call.1} parent=1 // pred_check_branch
      %112 = sbr.rel (0) target = $region49
    $region48: #{tpu_custom_call.1} parent=1 // pred_region
      %113 = dma.done [#allocation3], 1024
    $region49: #{tpu_custom_call.1} parent=1 // pred_fallthru
      _
    // Predicated region
    $region50: #{tpu_custom_call.1} parent=1 // pred_check
      _
    $region51: #{tpu_custom_call.1} parent=1 // pred_check_branch
      %115 = sbr.rel (0) target = $region53
    $region52: #{tpu_custom_call.1} parent=1 // pred_region
      %116 = dma.done [#allocation6], 64
    $region53: #{tpu_custom_call.1} parent=1 // pred_fallthru
      _
    // Predicated region
    $region54: #{tpu_custom_call.1} parent=1 // pred_check
      _
    $region55: #{tpu_custom_call.1} parent=1 // pred_check_branch
      %118 = sbr.rel (0) target = $region57
    $region56: #{tpu_custom_call.1} parent=1 // pred_region
      %119 = dma.done [#allocation6], 2048
    $region57: #{tpu_custom_call.1} parent=1 // pred_fallthru
      _
    // Predicated region
    $region58: #{tpu_custom_call.1} parent=1 // pred_check
      _
    $region59: #{tpu_custom_call.1} parent=1 // pred_check_branch
      %121 = sbr.rel (0) target = $region61
    $region60: #{tpu_custom_call.1} parent=1 // pred_region
      %122 = dma.done [#allocation9], 2048
    $region61: #{tpu_custom_call.1} parent=1 // pred_fallthru
      _
    // Predicated region
    $region62: #{tpu_custom_call.1} parent=1 // pred_check
      _
    $region63: #{tpu_custom_call.1} parent=1 // pred_check_branch
      %124 = sbr.rel (0) target = $region65
    $region64: #{tpu_custom_call.1} parent=1 // pred_region
      %125 = dma.done [#allocation9], 2048
    $region65: #{tpu_custom_call.1} parent=1 // pred_fallthru
      _
    // Predicated region
    $region66: #{tpu_custom_call.1} parent=1 // pred_check
      _
    $region67: #{tpu_custom_call.1} parent=1 // pred_check_branch
      %127 = sbr.rel (0) target = $region69
    $region68: #{tpu_custom_call.1} parent=1 // pred_region
      %128 = dma.done [#allocation12], 2048
    $region69: #{tpu_custom_call.1} parent=1 // pred_fallthru
      _
    // Predicated region
    $region70: #{tpu_custom_call.1} parent=1 // pred_check
      _
    $region71: #{tpu_custom_call.1} parent=1 // pred_check_branch
      %130 = sbr.rel (0) target = $region73
    $region72: #{tpu_custom_call.1} parent=1 // pred_region
      %131 = dma.done [#allocation12], 2048
    $region73: #{tpu_custom_call.1} parent=1 // pred_fallthru
      _
    %v133 = vld [vmem:[#allocation2] sm:$0xf]
    %v134 = vld [vmem:[#allocation2 + $0x4] sm:$0xf]
    %v135 = vld [vmem:[#allocation2 + $0x8] sm:$0xf]
    %v136 = vld [vmem:[#allocation2 + $0xc] sm:$0xf]
    %v137 = vld [vmem:[#allocation2 + $0x10] sm:$0xf]
    %v138 = vld [vmem:[#allocation2 + $0x14] sm:$0xf]
    %v139 = vld [vmem:[#allocation2 + $0x18] sm:$0xf]
    %v140 = vld [vmem:[#allocation2 + $0x1c] sm:$0xf]
    %v141 = vld [vmem:[#allocation2 + $0x20] sm:$0xf]
    %v142 = vld [vmem:[#allocation2 + $0x24] sm:$0xf]
    %v143 = vld [vmem:[#allocation2 + $0x28] sm:$0xf]
    %v144 = vld [vmem:[#allocation2 + $0x2c] sm:$0xf]
    %v145 = vld [vmem:[#allocation2 + $0x30] sm:$0xf]
    %v146 = vld [vmem:[#allocation2 + $0x34] sm:$0xf]
    %v147 = vld [vmem:[#allocation2 + $0x38] sm:$0xf]
    %v148 = vld [vmem:[#allocation2 + $0x3c] sm:$0xf]
    %v149 = vld [vmem:[#allocation7] sm:$0xff]
    %v150 = vld [vmem:[#allocation7 + $0x8] sm:$0xff]
    %v151 = vld [vmem:[#allocation7 + $0x10] sm:$0xff]
    %v152 = vld [vmem:[#allocation7 + $0x18] sm:$0xff]
    %v153 = vld [vmem:[#allocation7 + $0x20] sm:$0xff]
    %v154 = vld [vmem:[#allocation7 + $0x28] sm:$0xff]
    %v155 = vld [vmem:[#allocation7 + $0x30] sm:$0xff]
    %v156 = vld [vmem:[#allocation7 + $0x38] sm:$0xff]
    %v157 = vld [vmem:[#allocation7 + $0x40] sm:$0xff]
    %v158 = vld [vmem:[#allocation7 + $0x48] sm:$0xff]
    %v159 = vld [vmem:[#allocation7 + $0x50] sm:$0xff]
    %v160 = vld [vmem:[#allocation7 + $0x58] sm:$0xff]
    %v161 = vld [vmem:[#allocation7 + $0x60] sm:$0xff]
    %v162 = vld [vmem:[#allocation7 + $0x68] sm:$0xff]
    %v163 = vld [vmem:[#allocation7 + $0x70] sm:$0xff]
    %v164 = vld [vmem:[#allocation7 + $0x78] sm:$0xff]
    %v165 = vld [vmem:[#allocation8] sm:$0xff]
    %v166 = vld [vmem:[#allocation8 + $0x8] sm:$0xff]
    %v167 = vld [vmem:[#allocation8 + $0x10] sm:$0xff]
    %v168 = vld [vmem:[#allocation8 + $0x18] sm:$0xff]
    %v169 = vld [vmem:[#allocation8 + $0x20] sm:$0xff]
    %v170 = vld [vmem:[#allocation8 + $0x28] sm:$0xff]
    %v171 = vld [vmem:[#allocation8 + $0x30] sm:$0xff]
    %v172 = vld [vmem:[#allocation8 + $0x38] sm:$0xff]
    %v173 = vld [vmem:[#allocation8 + $0x40] sm:$0xff]
    %v174 = vld [vmem:[#allocation8 + $0x48] sm:$0xff]
    %v175 = vld [vmem:[#allocation8 + $0x50] sm:$0xff]
    %v176 = vld [vmem:[#allocation8 + $0x58] sm:$0xff]
    %v177 = vld [vmem:[#allocation8 + $0x60] sm:$0xff]
    %v178 = vld [vmem:[#allocation8 + $0x68] sm:$0xff]
    %v179 = vld [vmem:[#allocation8 + $0x70] sm:$0xff]
    %v180 = vld [vmem:[#allocation8 + $0x78] sm:$0xff]
    %181 = vmatprep.subr.mxu0 0.0
    %182 = vmatpush1.msra.mxu0 %v180
    %183 = vmatprep.subr.mxu0 0.0
    %184 = vmatpush1.msra.mxu0 %v179
    %185 = vmatprep.subr.mxu0 0.0
    %186 = vmatpush1.msra.mxu0 %v178
    %187 = vmatprep.subr.mxu0 0.0
    %188 = vmatpush1.msra.mxu0 %v177
    %189 = vmatprep.subr.mxu0 0.0
    %190 = vmatpush1.msra.mxu0 %v176
    %191 = vmatprep.subr.mxu0 0.0
    %192 = vmatpush1.msra.mxu0 %v175
    %193 = vmatprep.subr.mxu0 0.0
    %194 = vmatpush1.msra.mxu0 %v174
    %195 = vmatprep.subr.mxu0 0.0
    %196 = vmatpush1.msra.mxu0 %v173
    %197 = vmatprep.subr.mxu0 0.0
    %198 = vmatpush1.msra.mxu0 %v172
    %199 = vmatprep.subr.mxu0 0.0
    %200 = vmatpush1.msra.mxu0 %v171
    %201 = vmatprep.subr.mxu0 0.0
    %202 = vmatpush1.msra.mxu0 %v170
    %203 = vmatprep.subr.mxu0 0.0
    %204 = vmatpush1.msra.mxu0 %v169
    %205 = vmatprep.subr.mxu0 0.0
    %206 = vmatpush1.msra.mxu0 %v168
    %207 = vmatprep.subr.mxu0 0.0
    %208 = vmatpush1.msra.mxu0 %v167
    %209 = vmatprep.subr.mxu0 0.0
    %210 = vmatpush1.msra.mxu0 %v166
    %211 = vmatprep.subr.mxu0 0.0
    %212 = vmatpush1.msra.mxu0 %v165
    %213 = vmatprep.subr.mxu0 0.0
    %214 = vmatpush2.msra.mxu0 0.0
    %215 = vmatprep.subr.mxu0 0.0
    %216 = vmatpush2.msra.mxu0 0.0
    %217 = vmatprep.subr.mxu0 0.0
    %218 = vmatpush2.msra.mxu0 0.0
    %219 = vmatprep.subr.mxu0 0.0
    %220 = vmatpush2.msra.mxu0 0.0
    %221 = vmatprep.subr.mxu0 0.0
    %222 = vmatpush2.msra.mxu0 0.0
    %223 = vmatprep.subr.mxu0 0.0
    %224 = vmatpush2.msra.mxu0 0.0
    %225 = vmatprep.subr.mxu0 0.0
    %226 = vmatpush2.msra.mxu0 0.0
    %227 = vmatprep.subr.mxu0 0.0
    %228 = vmatpush2.msra.mxu0 0.0
    %229 = vmatprep.subr.mxu0 0.0
    %230 = vmatpush2.msra.mxu0 0.0
    %231 = vmatprep.subr.mxu0 0.0
    %232 = vmatpush2.msra.mxu0 0.0
    %233 = vmatprep.subr.mxu0 0.0
    %234 = vmatpush2.msra.mxu0 0.0
    %235 = vmatprep.subr.mxu0 0.0
    %236 = vmatpush2.msra.mxu0 0.0
    %237 = vmatprep.subr.mxu0 0.0
    %238 = vmatpush2.msra.mxu0 0.0
    %239 = vmatprep.subr.mxu0 0.0
    %240 = vmatpush2.msra.mxu0 0.0
    %241 = vmatprep.subr.mxu0 0.0
    %242 = vmatpush2.msra.mxu0 0.0
    %243 = vmatprep.subr.mxu0 0.0
    %244 = vmatpush2.msra.mxu0 0.0
    %245 = vmatprep.mubr.f32.mxu0 0.0
    %246 = vmatmul.mubr.f32.gmra.mxu0 %v149
    %v247 = vpop.f32.mrf.mxu0
    %v248 = vadd.f32 0.0, %v247
    %v249 = vpop.f32.mrf.mxu0
    %250 = vmatprep.mubr.f32.mxu0 0.0
    %251 = vmatmul.mubr.f32.gmra.mxu0 %v150
    %v252 = vpop.f32.mrf.mxu0
    %v253 = vadd.f32 0.0, %v252
    %v254 = vpop.f32.mrf.mxu0
    %255 = vmatprep.mubr.f32.mxu0 0.0
    %256 = vmatmul.mubr.f32.gmra.mxu0 %v151
    %v257 = vpop.f32.mrf.mxu0
    %v258 = vadd.f32 0.0, %v257
    %v259 = vpop.f32.mrf.mxu0
    %260 = vmatprep.mubr.f32.mxu0 0.0
    %261 = vmatmul.mubr.f32.gmra.mxu0 %v152
    %v262 = vpop.f32.mrf.mxu0
    %v263 = vadd.f32 0.0, %v262
    %v264 = vpop.f32.mrf.mxu0
    %265 = vmatprep.mubr.f32.mxu0 0.0
    %266 = vmatmul.mubr.f32.gmra.mxu0 %v153
    %v267 = vpop.f32.mrf.mxu0
    %v268 = vadd.f32 0.0, %v267
    %v269 = vpop.f32.mrf.mxu0
    %270 = vmatprep.mubr.f32.mxu0 0.0
    %271 = vmatmul.mubr.f32.gmra.mxu0 %v154
    %v272 = vpop.f32.mrf.mxu0
    %v273 = vadd.f32 0.0, %v272
    %v274 = vpop.f32.mrf.mxu0
    %275 = vmatprep.mubr.f32.mxu0 0.0
    %276 = vmatmul.mubr.f32.gmra.mxu0 %v155
    %v277 = vpop.f32.mrf.mxu0
    %v278 = vadd.f32 0.0, %v277
    %v279 = vpop.f32.mrf.mxu0
    %280 = vmatprep.mubr.f32.mxu0 0.0
    %281 = vmatmul.mubr.f32.gmra.mxu0 %v156
    %v282 = vpop.f32.mrf.mxu0
    %v283 = vadd.f32 0.0, %v282
    %v284 = vpop.f32.mrf.mxu0
    %285 = vmatprep.mubr.f32.mxu0 0.0
    %286 = vmatmul.mubr.f32.gmra.mxu0 %v157
    %v287 = vpop.f32.mrf.mxu0
    %v288 = vadd.f32 0.0, %v287
    %v289 = vpop.f32.mrf.mxu0
    %290 = vmatprep.mubr.f32.mxu0 0.0
    %291 = vmatmul.mubr.f32.gmra.mxu0 %v158
    %v292 = vpop.f32.mrf.mxu0
    %v293 = vadd.f32 0.0, %v292
    %v294 = vpop.f32.mrf.mxu0
    %295 = vmatprep.mubr.f32.mxu0 0.0
    %296 = vmatmul.mubr.f32.gmra.mxu0 %v159
    %v297 = vpop.f32.mrf.mxu0
    %v298 = vadd.f32 0.0, %v297
    %v299 = vpop.f32.mrf.mxu0
    %300 = vmatprep.mubr.f32.mxu0 0.0
    %301 = vmatmul.mubr.f32.gmra.mxu0 %v160
    %v302 = vpop.f32.mrf.mxu0
    %v303 = vadd.f32 0.0, %v302
    %v304 = vpop.f32.mrf.mxu0
    %305 = vmatprep.mubr.f32.mxu0 0.0
    %306 = vmatmul.mubr.f32.gmra.mxu0 %v161
    %v307 = vpop.f32.mrf.mxu0
    %v308 = vadd.f32 0.0, %v307
    %v309 = vpop.f32.mrf.mxu0
    %310 = vmatprep.mubr.f32.mxu0 0.0
    %311 = vmatmul.mubr.f32.gmra.mxu0 %v162
    %v312 = vpop.f32.mrf.mxu0
    %v313 = vadd.f32 0.0, %v312
    %v314 = vpop.f32.mrf.mxu0
    %315 = vmatprep.mubr.f32.mxu0 0.0
    %316 = vmatmul.mubr.f32.gmra.mxu0 %v163
    %v317 = vpop.f32.mrf.mxu0
    %v318 = vadd.f32 0.0, %v317
    %v319 = vpop.f32.mrf.mxu0
    %320 = vmatprep.mubr.f32.mxu0 0.0
    %321 = vmatmul.mubr.f32.gmra.mxu0 %v164
    %v322 = vpop.f32.mrf.mxu0
    %v323 = vadd.f32 0.0, %v322
    %v324 = vpop.f32.mrf.mxu0
    %325 = vdwg.mxu0
    %v326 = vpack.c.bf16 %v253, %v248
    %v327 = vpack.c.bf16 %v263, %v258
    %v328 = vpack.c.bf16 %v273, %v268
    %v329 = vpack.c.bf16 %v283, %v278
    %v330 = vpack.c.bf16 %v293, %v288
    %v331 = vpack.c.bf16 %v303, %v298
    %v332 = vpack.c.bf16 %v313, %v308
    %v333 = vpack.c.bf16 %v323, %v318
    %v334 = vld [vmem:[%s4] sm:$0x1]
    %v336 = vlaneseq
    %v337 = vshrl.u32 %v336, 7
    %v338 = vsub.s32 0, %v337
    %v339 = vrot.slane %v334, %v338
    %v357 = vunpack.c.l.b16 %v133
    %v358 = vunpack.c.l.b16 %v134
    %v359 = vunpack.c.l.b16 %v135
    %v360 = vunpack.c.l.b16 %v136
    %v361 = vunpack.c.l.b16 %v137
    %v362 = vunpack.c.l.b16 %v138
    %v363 = vunpack.c.l.b16 %v139
    %v364 = vunpack.c.l.b16 %v140
    %v365 = vunpack.c.l.b16 %v141
    %v366 = vunpack.c.l.b16 %v142
    %v367 = vunpack.c.l.b16 %v143
    %v368 = vunpack.c.l.b16 %v144
    %v369 = vunpack.c.l.b16 %v145
    %v370 = vunpack.c.l.b16 %v146
    %v371 = vunpack.c.l.b16 %v147
    %v372 = vunpack.c.l.b16 %v148
    %v373 = vpack.c.b16 %v358, %v357
    %v374 = vpack.c.b16 %v360, %v359
    %v375 = vpack.c.b16 %v362, %v361
    %v376 = vpack.c.b16 %v364, %v363
    %v377 = vpack.c.b16 %v366, %v365
    %v378 = vpack.c.b16 %v368, %v367
    %v379 = vpack.c.b16 %v370, %v369
    %v380 = vpack.c.b16 %v372, %v371
    %389 = vmatprep.subr.bf16.mxu0 0
    %390 = vmatpush1.bf16.msra.mxu0 %v333
    %391 = vmatprep.subr.bf16.mxu0 0
    %392 = vmatpush1.bf16.msra.mxu0 %v332
    %393 = vmatprep.subr.bf16.mxu0 0
    %394 = vmatpush1.bf16.msra.mxu0 %v331
    %395 = vmatprep.subr.bf16.mxu0 0
    %396 = vmatpush1.bf16.msra.mxu0 %v330
    %397 = vmatprep.subr.bf16.mxu0 0
    %398 = vmatpush1.bf16.msra.mxu0 %v329
    %399 = vmatprep.subr.bf16.mxu0 0
    %400 = vmatpush1.bf16.msra.mxu0 %v328
    %401 = vmatprep.subr.bf16.mxu0 0
    %402 = vmatpush1.bf16.msra.mxu0 %v327
    %403 = vmatprep.subr.bf16.mxu0 0
    %404 = vmatpush1.bf16.msra.mxu0 %v326
    %405 = vmatprep.subr.bf16.mxu0 0
    %406 = vmatpush2.bf16.msra.mxu0 0
    %407 = vmatprep.subr.bf16.mxu0 0
    %408 = vmatpush2.bf16.msra.mxu0 0
    %409 = vmatprep.subr.bf16.mxu0 0
    %410 = vmatpush2.bf16.msra.mxu0 0
    %411 = vmatprep.subr.bf16.mxu0 0
    %412 = vmatpush2.bf16.msra.mxu0 0
    %413 = vmatprep.subr.bf16.mxu0 0
    %414 = vmatpush2.bf16.msra.mxu0 0
    %415 = vmatprep.subr.bf16.mxu0 0
    %416 = vmatpush2.bf16.msra.mxu0 0
    %417 = vmatprep.subr.bf16.mxu0 0
    %418 = vmatpush2.bf16.msra.mxu0 0
    %419 = vmatprep.subr.bf16.mxu0 0
    %420 = vmatpush2.bf16.msra.mxu0 0
    %421 = vmatprep.mubr.bf16.mxu0 0
    %422 = vmatmul.mubr.bf16.gmra.mxu0 %v373
    %v423 = vpop.f32.mrf.mxu0
    %v424 = vadd.f32 %v339, %v423
    %v425 = vpop.f32.mrf.mxu0
    %v426 = vpop.f32.mrf.mxu0
    %v427 = vadd.f32 %v339, %v426
    %v428 = vpop.f32.mrf.mxu0
    %429 = vmatprep.mubr.bf16.mxu0 0
    %430 = vmatmul.mubr.bf16.gmra.mxu0 %v374
    %v431 = vpop.f32.mrf.mxu0
    %v432 = vadd.f32 %v339, %v431
    %v433 = vpop.f32.mrf.mxu0
    %v434 = vpop.f32.mrf.mxu0
    %v435 = vadd.f32 %v339, %v434
    %v436 = vpop.f32.mrf.mxu0
    %437 = vmatprep.mubr.bf16.mxu0 0
    %438 = vmatmul.mubr.bf16.gmra.mxu0 %v375
    %v439 = vpop.f32.mrf.mxu0
    %v440 = vadd.f32 %v339, %v439
    %v441 = vpop.f32.mrf.mxu0
    %v442 = vpop.f32.mrf.mxu0
    %v443 = vadd.f32 %v339, %v442
    %v444 = vpop.f32.mrf.mxu0
    %445 = vmatprep.mubr.bf16.mxu0 0
    %446 = vmatmul.mubr.bf16.gmra.mxu0 %v376
    %v447 = vpop.f32.mrf.mxu0
    %v448 = vadd.f32 %v339, %v447
    %v449 = vpop.f32.mrf.mxu0
    %v450 = vpop.f32.mrf.mxu0
    %v451 = vadd.f32 %v339, %v450
    %v452 = vpop.f32.mrf.mxu0
    %453 = vmatprep.mubr.bf16.mxu0 0
    %454 = vmatmul.mubr.bf16.gmra.mxu0 %v377
    %v455 = vpop.f32.mrf.mxu0
    %v456 = vadd.f32 %v339, %v455
    %v457 = vpop.f32.mrf.mxu0
    %v458 = vpop.f32.mrf.mxu0
    %v459 = vadd.f32 %v339, %v458
    %v460 = vpop.f32.mrf.mxu0
    %461 = vmatprep.mubr.bf16.mxu0 0
    %462 = vmatmul.mubr.bf16.gmra.mxu0 %v378
    %v463 = vpop.f32.mrf.mxu0
    %v464 = vadd.f32 %v339, %v463
    %v465 = vpop.f32.mrf.mxu0
    %v466 = vpop.f32.mrf.mxu0
    %v467 = vadd.f32 %v339, %v466
    %v468 = vpop.f32.mrf.mxu0
    %469 = vmatprep.mubr.bf16.mxu0 0
    %470 = vmatmul.mubr.bf16.gmra.mxu0 %v379
    %v471 = vpop.f32.mrf.mxu0
    %v472 = vadd.f32 %v339, %v471
    %v473 = vpop.f32.mrf.mxu0
    %v474 = vpop.f32.mrf.mxu0
    %v475 = vadd.f32 %v339, %v474
    %v476 = vpop.f32.mrf.mxu0
    %477 = vmatprep.mubr.bf16.mxu0 0
    %478 = vmatmul.mubr.bf16.gmra.mxu0 %v380
    %v479 = vpop.f32.mrf.mxu0
    %v480 = vadd.f32 %v339, %v479
    %v481 = vpop.f32.mrf.mxu0
    %v482 = vpop.f32.mrf.mxu0
    %v483 = vadd.f32 %v339, %v482
    %v484 = vpop.f32.mrf.mxu0
    %485 = vdwg.mxu0
    %v486 = vmax.f32 %v424, 0.0
    %v487 = vmax.f32 %v427, 0.0
    %v488 = vmax.f32 %v432, 0.0
    %v489 = vmax.f32 %v435, 0.0
    %v490 = vmax.f32 %v440, 0.0
    %v491 = vmax.f32 %v443, 0.0
    %v492 = vmax.f32 %v448, 0.0
    %v493 = vmax.f32 %v451, 0.0
    %v494 = vmax.f32 %v456, 0.0
    %v495 = vmax.f32 %v459, 0.0
    %v496 = vmax.f32 %v464, 0.0
    %v497 = vmax.f32 %v467, 0.0
    %v498 = vmax.f32 %v472, 0.0
    %v499 = vmax.f32 %v475, 0.0
    %v500 = vmax.f32 %v480, 0.0
    %v501 = vmax.f32 %v483, 0.0
    %v502 = vpack.c.bf16 %v487, %v486
    %v503 = vpack.c.bf16 %v489, %v488
    %v504 = vpack.c.bf16 %v491, %v490
    %v505 = vpack.c.bf16 %v493, %v492
    %v506 = vpack.c.bf16 %v495, %v494
    %v507 = vpack.c.bf16 %v497, %v496
    %v508 = vpack.c.bf16 %v499, %v498
    %v509 = vpack.c.bf16 %v501, %v500
    %v510 = vunpack.c.l.bf16 %v502
    %v511 = vunpack.c.h.bf16 %v502
    %v512 = vunpack.c.l.bf16 %v503
    %v513 = vunpack.c.h.bf16 %v503
    %v514 = vunpack.c.l.bf16 %v504
    %v515 = vunpack.c.h.bf16 %v504
    %v516 = vunpack.c.l.bf16 %v505
    %v517 = vunpack.c.h.bf16 %v505
    %v518 = vunpack.c.l.bf16 %v506
    %v519 = vunpack.c.h.bf16 %v506
    %v520 = vunpack.c.l.bf16 %v507
    %v521 = vunpack.c.h.bf16 %v507
    %v522 = vunpack.c.l.bf16 %v508
    %v523 = vunpack.c.h.bf16 %v508
    %v524 = vunpack.c.l.bf16 %v509
    %v525 = vunpack.c.h.bf16 %v509
    %v526 = vld [vmem:[#allocation10] sm:$0xff]
    %v527 = vld [vmem:[#allocation10 + $0x8] sm:$0xff]
    %v528 = vld [vmem:[#allocation10 + $0x10] sm:$0xff]
    %v529 = vld [vmem:[#allocation10 + $0x18] sm:$0xff]
    %v530 = vld [vmem:[#allocation10 + $0x20] sm:$0xff]
    %v531 = vld [vmem:[#allocation10 + $0x28] sm:$0xff]
    %v532 = vld [vmem:[#allocation10 + $0x30] sm:$0xff]
    %v533 = vld [vmem:[#allocation10 + $0x38] sm:$0xff]
    %v534 = vld [vmem:[#allocation10 + $0x40] sm:$0xff]
    %v535 = vld [vmem:[#allocation10 + $0x48] sm:$0xff]
    %v536 = vld [vmem:[#allocation10 + $0x50] sm:$0xff]
    %v537 = vld [vmem:[#allocation10 + $0x58] sm:$0xff]
    %v538 = vld [vmem:[#allocation10 + $0x60] sm:$0xff]
    %v539 = vld [vmem:[#allocation10 + $0x68] sm:$0xff]
    %v540 = vld [vmem:[#allocation10 + $0x70] sm:$0xff]
    %v541 = vld [vmem:[#allocation10 + $0x78] sm:$0xff]
    %542 = vmatprep.subr.mxu0 0.0
    %543 = vmatpush1.msra.mxu0 %v541
    %544 = vmatprep.subr.mxu0 0.0
    %545 = vmatpush1.msra.mxu0 %v540
    %546 = vmatprep.subr.mxu0 0.0
    %547 = vmatpush1.msra.mxu0 %v539
    %548 = vmatprep.subr.mxu0 0.0
    %549 = vmatpush1.msra.mxu0 %v538
    %550 = vmatprep.subr.mxu0 0.0
    %551 = vmatpush1.msra.mxu0 %v537
    %552 = vmatprep.subr.mxu0 0.0
    %553 = vmatpush1.msra.mxu0 %v536
    %554 = vmatprep.subr.mxu0 0.0
    %555 = vmatpush1.msra.mxu0 %v535
    %556 = vmatprep.subr.mxu0 0.0
    %557 = vmatpush1.msra.mxu0 %v534
    %558 = vmatprep.subr.mxu0 0.0
    %559 = vmatpush1.msra.mxu0 %v533
    %560 = vmatprep.subr.mxu0 0.0
    %561 = vmatpush1.msra.mxu0 %v532
    %562 = vmatprep.subr.mxu0 0.0
    %563 = vmatpush1.msra.mxu0 %v531
    %564 = vmatprep.subr.mxu0 0.0
    %565 = vmatpush1.msra.mxu0 %v530
    %566 = vmatprep.subr.mxu0 0.0
    %567 = vmatpush1.msra.mxu0 %v529
    %568 = vmatprep.subr.mxu0 0.0
    %569 = vmatpush1.msra.mxu0 %v528
    %570 = vmatprep.subr.mxu0 0.0
    %571 = vmatpush1.msra.mxu0 %v527
    %572 = vmatprep.subr.mxu0 0.0
    %573 = vmatpush1.msra.mxu0 %v526
    %574 = vmatprep.subr.mxu0 0.0
    %575 = vmatpush2.msra.mxu0 0.0
    %576 = vmatprep.subr.mxu0 0.0
    %577 = vmatpush2.msra.mxu0 0.0
    %578 = vmatprep.subr.mxu0 0.0
    %579 = vmatpush2.msra.mxu0 0.0
    %580 = vmatprep.subr.mxu0 0.0
    %581 = vmatpush2.msra.mxu0 0.0
    %582 = vmatprep.subr.mxu0 0.0
    %583 = vmatpush2.msra.mxu0 0.0
    %584 = vmatprep.subr.mxu0 0.0
    %585 = vmatpush2.msra.mxu0 0.0
    %586 = vmatprep.subr.mxu0 0.0
    %587 = vmatpush2.msra.mxu0 0.0
    %588 = vmatprep.subr.mxu0 0.0
    %589 = vmatpush2.msra.mxu0 0.0
    %590 = vmatprep.subr.mxu0 0.0
    %591 = vmatpush2.msra.mxu0 0.0
    %592 = vmatprep.subr.mxu0 0.0
    %593 = vmatpush2.msra.mxu0 0.0
    %594 = vmatprep.subr.mxu0 0.0
    %595 = vmatpush2.msra.mxu0 0.0
    %596 = vmatprep.subr.mxu0 0.0
    %597 = vmatpush2.msra.mxu0 0.0
    %598 = vmatprep.subr.mxu0 0.0
    %599 = vmatpush2.msra.mxu0 0.0
    %600 = vmatprep.subr.mxu0 0.0
    %601 = vmatpush2.msra.mxu0 0.0
    %602 = vmatprep.subr.mxu0 0.0
    %603 = vmatpush2.msra.mxu0 0.0
    %604 = vmatprep.subr.mxu0 0.0
    %605 = vmatpush2.msra.mxu0 0.0
    %606 = vmatprep.mubr.f32.mxu0 0.0
    %607 = vmatmul.mubr.f32.gmra.mxu0 %v510
    %v608 = vpop.f32.mrf.mxu0
    %v609 = vadd.f32 0.0, %v608
    %v610 = vpop.f32.mrf.mxu0
    %611 = vmatprep.mubr.f32.mxu0 0.0
    %612 = vmatmul.mubr.f32.gmra.mxu0 %v511
    %v613 = vpop.f32.mrf.mxu0
    %v614 = vadd.f32 0.0, %v613
    %v615 = vpop.f32.mrf.mxu0
    %616 = vmatprep.mubr.f32.mxu0 0.0
    %617 = vmatmul.mubr.f32.gmra.mxu0 %v512
    %v618 = vpop.f32.mrf.mxu0
    %v619 = vadd.f32 0.0, %v618
    %v620 = vpop.f32.mrf.mxu0
    %621 = vmatprep.mubr.f32.mxu0 0.0
    %622 = vmatmul.mubr.f32.gmra.mxu0 %v513
    %v623 = vpop.f32.mrf.mxu0
    %v624 = vadd.f32 0.0, %v623
    %v625 = vpop.f32.mrf.mxu0
    %626 = vmatprep.mubr.f32.mxu0 0.0
    %627 = vmatmul.mubr.f32.gmra.mxu0 %v514
    %v628 = vpop.f32.mrf.mxu0
    %v629 = vadd.f32 0.0, %v628
    %v630 = vpop.f32.mrf.mxu0
    %631 = vmatprep.mubr.f32.mxu0 0.0
    %632 = vmatmul.mubr.f32.gmra.mxu0 %v515
    %v633 = vpop.f32.mrf.mxu0
    %v634 = vadd.f32 0.0, %v633
    %v635 = vpop.f32.mrf.mxu0
    %636 = vmatprep.mubr.f32.mxu0 0.0
    %637 = vmatmul.mubr.f32.gmra.mxu0 %v516
    %v638 = vpop.f32.mrf.mxu0
    %v639 = vadd.f32 0.0, %v638
    %v640 = vpop.f32.mrf.mxu0
    %641 = vmatprep.mubr.f32.mxu0 0.0
    %642 = vmatmul.mubr.f32.gmra.mxu0 %v517
    %v643 = vpop.f32.mrf.mxu0
    %v644 = vadd.f32 0.0, %v643
    %v645 = vpop.f32.mrf.mxu0
    %646 = vmatprep.mubr.f32.mxu0 0.0
    %647 = vmatmul.mubr.f32.gmra.mxu0 %v518
    %v648 = vpop.f32.mrf.mxu0
    %v649 = vadd.f32 0.0, %v648
    %v650 = vpop.f32.mrf.mxu0
    %651 = vmatprep.mubr.f32.mxu0 0.0
    %652 = vmatmul.mubr.f32.gmra.mxu0 %v519
    %v653 = vpop.f32.mrf.mxu0
    %v654 = vadd.f32 0.0, %v653
    %v655 = vpop.f32.mrf.mxu0
    %656 = vmatprep.mubr.f32.mxu0 0.0
    %657 = vmatmul.mubr.f32.gmra.mxu0 %v520
    %v658 = vpop.f32.mrf.mxu0
    %v659 = vadd.f32 0.0, %v658
    %v660 = vpop.f32.mrf.mxu0
    %661 = vmatprep.mubr.f32.mxu0 0.0
    %662 = vmatmul.mubr.f32.gmra.mxu0 %v521
    %v663 = vpop.f32.mrf.mxu0
    %v664 = vadd.f32 0.0, %v663
    %v665 = vpop.f32.mrf.mxu0
    %666 = vmatprep.mubr.f32.mxu0 0.0
    %667 = vmatmul.mubr.f32.gmra.mxu0 %v522
    %v668 = vpop.f32.mrf.mxu0
    %v669 = vadd.f32 0.0, %v668
    %v670 = vpop.f32.mrf.mxu0
    %671 = vmatprep.mubr.f32.mxu0 0.0
    %672 = vmatmul.mubr.f32.gmra.mxu0 %v523
    %v673 = vpop.f32.mrf.mxu0
    %v674 = vadd.f32 0.0, %v673
    %v675 = vpop.f32.mrf.mxu0
    %676 = vmatprep.mubr.f32.mxu0 0.0
    %677 = vmatmul.mubr.f32.gmra.mxu0 %v524
    %v678 = vpop.f32.mrf.mxu0
    %v679 = vadd.f32 0.0, %v678
    %v680 = vpop.f32.mrf.mxu0
    %681 = vmatprep.mubr.f32.mxu0 0.0
    %682 = vmatmul.mubr.f32.gmra.mxu0 %v525
    %v683 = vpop.f32.mrf.mxu0
    %v684 = vadd.f32 0.0, %v683
    %v685 = vpop.f32.mrf.mxu0
    %686 = vdwg.mxu0
    %v687 = vpack.c.bf16 %v614, %v609
    %v688 = vpack.c.bf16 %v624, %v619
    %v689 = vpack.c.bf16 %v634, %v629
    %v690 = vpack.c.bf16 %v644, %v639
    %v691 = vpack.c.bf16 %v654, %v649
    %v692 = vpack.c.bf16 %v664, %v659
    %v693 = vpack.c.bf16 %v674, %v669
    %v694 = vpack.c.bf16 %v684, %v679
    %v695 = vld [vmem:[%s6] sm:$0x1]
    %v697 = vlaneseq
    %v698 = vshrl.u32 %v697, 7
    %v699 = vsub.s32 0, %v698
    %v700 = vrot.slane %v695, %v699
    %702 = vmatprep.subr.bf16.mxu0 0
    %703 = vmatpush1.bf16.msra.mxu0 %v694
    %704 = vmatprep.subr.bf16.mxu0 0
    %705 = vmatpush1.bf16.msra.mxu0 %v693
    %706 = vmatprep.subr.bf16.mxu0 0
    %707 = vmatpush1.bf16.msra.mxu0 %v692
    %708 = vmatprep.subr.bf16.mxu0 0
    %709 = vmatpush1.bf16.msra.mxu0 %v691
    %710 = vmatprep.subr.bf16.mxu0 0
    %711 = vmatpush1.bf16.msra.mxu0 %v690
    %712 = vmatprep.subr.bf16.mxu0 0
    %713 = vmatpush1.bf16.msra.mxu0 %v689
    %714 = vmatprep.subr.bf16.mxu0 0
    %715 = vmatpush1.bf16.msra.mxu0 %v688
    %716 = vmatprep.subr.bf16.mxu0 0
    %717 = vmatpush1.bf16.msra.mxu0 %v687
    %718 = vmatprep.subr.bf16.mxu0 0
    %719 = vmatpush2.bf16.msra.mxu0 0
    %720 = vmatprep.subr.bf16.mxu0 0
    %721 = vmatpush2.bf16.msra.mxu0 0
    %722 = vmatprep.subr.bf16.mxu0 0
    %723 = vmatpush2.bf16.msra.mxu0 0
    %724 = vmatprep.subr.bf16.mxu0 0
    %725 = vmatpush2.bf16.msra.mxu0 0
    %726 = vmatprep.subr.bf16.mxu0 0
    %727 = vmatpush2.bf16.msra.mxu0 0
    %728 = vmatprep.subr.bf16.mxu0 0
    %729 = vmatpush2.bf16.msra.mxu0 0
    %730 = vmatprep.subr.bf16.mxu0 0
    %731 = vmatpush2.bf16.msra.mxu0 0
    %732 = vmatprep.subr.bf16.mxu0 0
    %733 = vmatpush2.bf16.msra.mxu0 0
    %734 = vmatprep.mubr.bf16.mxu0 0
    %735 = vmatmul.mubr.bf16.gmra.mxu0 %v373
    %v736 = vpop.f32.mrf.mxu0
    %v737 = vadd.f32 %v700, %v736
    %v738 = vpop.f32.mrf.mxu0
    %v739 = vpop.f32.mrf.mxu0
    %v740 = vadd.f32 %v700, %v739
    %v741 = vpop.f32.mrf.mxu0
    %742 = vmatprep.mubr.bf16.mxu0 0
    %743 = vmatmul.mubr.bf16.gmra.mxu0 %v374
    %v744 = vpop.f32.mrf.mxu0
    %v745 = vadd.f32 %v700, %v744
    %v746 = vpop.f32.mrf.mxu0
    %v747 = vpop.f32.mrf.mxu0
    %v748 = vadd.f32 %v700, %v747
    %v749 = vpop.f32.mrf.mxu0
    %750 = vmatprep.mubr.bf16.mxu0 0
    %751 = vmatmul.mubr.bf16.gmra.mxu0 %v375
    %v752 = vpop.f32.mrf.mxu0
    %v753 = vadd.f32 %v700, %v752
    %v754 = vpop.f32.mrf.mxu0
    %v755 = vpop.f32.mrf.mxu0
    %v756 = vadd.f32 %v700, %v755
    %v757 = vpop.f32.mrf.mxu0
    %758 = vmatprep.mubr.bf16.mxu0 0
    %759 = vmatmul.mubr.bf16.gmra.mxu0 %v376
    %v760 = vpop.f32.mrf.mxu0
    %v761 = vadd.f32 %v700, %v760
    %v762 = vpop.f32.mrf.mxu0
    %v763 = vpop.f32.mrf.mxu0
    %v764 = vadd.f32 %v700, %v763
    %v765 = vpop.f32.mrf.mxu0
    %766 = vmatprep.mubr.bf16.mxu0 0
    %767 = vmatmul.mubr.bf16.gmra.mxu0 %v377
    %v768 = vpop.f32.mrf.mxu0
    %v769 = vadd.f32 %v700, %v768
    %v770 = vpop.f32.mrf.mxu0
    %v771 = vpop.f32.mrf.mxu0
    %v772 = vadd.f32 %v700, %v771
    %v773 = vpop.f32.mrf.mxu0
    %774 = vmatprep.mubr.bf16.mxu0 0
    %775 = vmatmul.mubr.bf16.gmra.mxu0 %v378
    %v776 = vpop.f32.mrf.mxu0
    %v777 = vadd.f32 %v700, %v776
    %v778 = vpop.f32.mrf.mxu0
    %v779 = vpop.f32.mrf.mxu0
    %v780 = vadd.f32 %v700, %v779
    %v781 = vpop.f32.mrf.mxu0
    %782 = vmatprep.mubr.bf16.mxu0 0
    %783 = vmatmul.mubr.bf16.gmra.mxu0 %v379
    %v784 = vpop.f32.mrf.mxu0
    %v785 = vadd.f32 %v700, %v784
    %v786 = vpop.f32.mrf.mxu0
    %v787 = vpop.f32.mrf.mxu0
    %v788 = vadd.f32 %v700, %v787
    %v789 = vpop.f32.mrf.mxu0
    %790 = vmatprep.mubr.bf16.mxu0 0
    %791 = vmatmul.mubr.bf16.gmra.mxu0 %v380
    %v792 = vpop.f32.mrf.mxu0
    %v793 = vadd.f32 %v700, %v792
    %v794 = vpop.f32.mrf.mxu0
    %v795 = vpop.f32.mrf.mxu0
    %v796 = vadd.f32 %v700, %v795
    %v797 = vpop.f32.mrf.mxu0
    %798 = vdwg.mxu0
    %v799 = vmax.f32 %v737, 0.0
    %v800 = vmax.f32 %v740, 0.0
    %v801 = vmax.f32 %v745, 0.0
    %v802 = vmax.f32 %v748, 0.0
    %v803 = vmax.f32 %v753, 0.0
    %v804 = vmax.f32 %v756, 0.0
    %v805 = vmax.f32 %v761, 0.0
    %v806 = vmax.f32 %v764, 0.0
    %v807 = vmax.f32 %v769, 0.0
    %v808 = vmax.f32 %v772, 0.0
    %v809 = vmax.f32 %v777, 0.0
    %v810 = vmax.f32 %v780, 0.0
    %v811 = vmax.f32 %v785, 0.0
    %v812 = vmax.f32 %v788, 0.0
    %v813 = vmax.f32 %v793, 0.0
    %v814 = vmax.f32 %v796, 0.0
    %v815 = vpack.c.bf16 %v800, %v799
    %v816 = vpack.c.bf16 %v802, %v801
    %v817 = vpack.c.bf16 %v804, %v803
    %v818 = vpack.c.bf16 %v806, %v805
    %v819 = vpack.c.bf16 %v808, %v807
    %v820 = vpack.c.bf16 %v810, %v809
    %v821 = vpack.c.bf16 %v812, %v811
    %v822 = vpack.c.bf16 %v814, %v813
    %v823 = vunpack.c.l.bf16 %v815
    %v824 = vunpack.c.h.bf16 %v815
    %v825 = vunpack.c.l.bf16 %v816
    %v826 = vunpack.c.h.bf16 %v816
    %v827 = vunpack.c.l.bf16 %v817
    %v828 = vunpack.c.h.bf16 %v817
    %v829 = vunpack.c.l.bf16 %v818
    %v830 = vunpack.c.h.bf16 %v818
    %v831 = vunpack.c.l.bf16 %v819
    %v832 = vunpack.c.h.bf16 %v819
    %v833 = vunpack.c.l.bf16 %v820
    %v834 = vunpack.c.h.bf16 %v820
    %v835 = vunpack.c.l.bf16 %v821
    %v836 = vunpack.c.h.bf16 %v821
    %v837 = vunpack.c.l.bf16 %v822
    %v838 = vunpack.c.h.bf16 %v822
    %v839 = vld [vmem:[#allocation11] sm:$0xff]
    %v840 = vld [vmem:[#allocation11 + $0x8] sm:$0xff]
    %v841 = vld [vmem:[#allocation11 + $0x10] sm:$0xff]
    %v842 = vld [vmem:[#allocation11 + $0x18] sm:$0xff]
    %v843 = vld [vmem:[#allocation11 + $0x20] sm:$0xff]
    %v844 = vld [vmem:[#allocation11 + $0x28] sm:$0xff]
    %v845 = vld [vmem:[#allocation11 + $0x30] sm:$0xff]
    %v846 = vld [vmem:[#allocation11 + $0x38] sm:$0xff]
    %v847 = vld [vmem:[#allocation11 + $0x40] sm:$0xff]
    %v848 = vld [vmem:[#allocation11 + $0x48] sm:$0xff]
    %v849 = vld [vmem:[#allocation11 + $0x50] sm:$0xff]
    %v850 = vld [vmem:[#allocation11 + $0x58] sm:$0xff]
    %v851 = vld [vmem:[#allocation11 + $0x60] sm:$0xff]
    %v852 = vld [vmem:[#allocation11 + $0x68] sm:$0xff]
    %v853 = vld [vmem:[#allocation11 + $0x70] sm:$0xff]
    %v854 = vld [vmem:[#allocation11 + $0x78] sm:$0xff]
    %855 = vmatprep.subr.mxu0 0.0
    %856 = vmatpush1.msra.mxu0 %v854
    %857 = vmatprep.subr.mxu0 0.0
    %858 = vmatpush1.msra.mxu0 %v853
    %859 = vmatprep.subr.mxu0 0.0
    %860 = vmatpush1.msra.mxu0 %v852
    %861 = vmatprep.subr.mxu0 0.0
    %862 = vmatpush1.msra.mxu0 %v851
    %863 = vmatprep.subr.mxu0 0.0
    %864 = vmatpush1.msra.mxu0 %v850
    %865 = vmatprep.subr.mxu0 0.0
    %866 = vmatpush1.msra.mxu0 %v849
    %867 = vmatprep.subr.mxu0 0.0
    %868 = vmatpush1.msra.mxu0 %v848
    %869 = vmatprep.subr.mxu0 0.0
    %870 = vmatpush1.msra.mxu0 %v847
    %871 = vmatprep.subr.mxu0 0.0
    %872 = vmatpush1.msra.mxu0 %v846
    %873 = vmatprep.subr.mxu0 0.0
    %874 = vmatpush1.msra.mxu0 %v845
    %875 = vmatprep.subr.mxu0 0.0
    %876 = vmatpush1.msra.mxu0 %v844
    %877 = vmatprep.subr.mxu0 0.0
    %878 = vmatpush1.msra.mxu0 %v843
    %879 = vmatprep.subr.mxu0 0.0
    %880 = vmatpush1.msra.mxu0 %v842
    %881 = vmatprep.subr.mxu0 0.0
    %882 = vmatpush1.msra.mxu0 %v841
    %883 = vmatprep.subr.mxu0 0.0
    %884 = vmatpush1.msra.mxu0 %v840
    %885 = vmatprep.subr.mxu0 0.0
    %886 = vmatpush1.msra.mxu0 %v839
    %887 = vmatprep.subr.mxu0 0.0
    %888 = vmatpush2.msra.mxu0 0.0
    %889 = vmatprep.subr.mxu0 0.0
    %890 = vmatpush2.msra.mxu0 0.0
    %891 = vmatprep.subr.mxu0 0.0
    %892 = vmatpush2.msra.mxu0 0.0
    %893 = vmatprep.subr.mxu0 0.0
    %894 = vmatpush2.msra.mxu0 0.0
    %895 = vmatprep.subr.mxu0 0.0
    %896 = vmatpush2.msra.mxu0 0.0
    %897 = vmatprep.subr.mxu0 0.0
    %898 = vmatpush2.msra.mxu0 0.0
    %899 = vmatprep.subr.mxu0 0.0
    %900 = vmatpush2.msra.mxu0 0.0
    %901 = vmatprep.subr.mxu0 0.0
    %902 = vmatpush2.msra.mxu0 0.0
    %903 = vmatprep.subr.mxu0 0.0
    %904 = vmatpush2.msra.mxu0 0.0
    %905 = vmatprep.subr.mxu0 0.0
    %906 = vmatpush2.msra.mxu0 0.0
    %907 = vmatprep.subr.mxu0 0.0
    %908 = vmatpush2.msra.mxu0 0.0
    %909 = vmatprep.subr.mxu0 0.0
    %910 = vmatpush2.msra.mxu0 0.0
    %911 = vmatprep.subr.mxu0 0.0
    %912 = vmatpush2.msra.mxu0 0.0
    %913 = vmatprep.subr.mxu0 0.0
    %914 = vmatpush2.msra.mxu0 0.0
    %915 = vmatprep.subr.mxu0 0.0
    %916 = vmatpush2.msra.mxu0 0.0
    %917 = vmatprep.subr.mxu0 0.0
    %918 = vmatpush2.msra.mxu0 0.0
    %919 = vmatprep.mubr.f32.mxu0 0.0
    %920 = vmatmul.mubr.f32.gmra.mxu0 %v823
    %v921 = vpop.f32.mrf.mxu0
    %v922 = vadd.f32 0.0, %v921
    %v923 = vpop.f32.mrf.mxu0
    %924 = vmatprep.mubr.f32.mxu0 0.0
    %925 = vmatmul.mubr.f32.gmra.mxu0 %v824
    %v926 = vpop.f32.mrf.mxu0
    %v927 = vadd.f32 0.0, %v926
    %v928 = vpop.f32.mrf.mxu0
    %929 = vmatprep.mubr.f32.mxu0 0.0
    %930 = vmatmul.mubr.f32.gmra.mxu0 %v825
    %v931 = vpop.f32.mrf.mxu0
    %v932 = vadd.f32 0.0, %v931
    %v933 = vpop.f32.mrf.mxu0
    %934 = vmatprep.mubr.f32.mxu0 0.0
    %935 = vmatmul.mubr.f32.gmra.mxu0 %v826
    %v936 = vpop.f32.mrf.mxu0
    %v937 = vadd.f32 0.0, %v936
    %v938 = vpop.f32.mrf.mxu0
    %939 = vmatprep.mubr.f32.mxu0 0.0
    %940 = vmatmul.mubr.f32.gmra.mxu0 %v827
    %v941 = vpop.f32.mrf.mxu0
    %v942 = vadd.f32 0.0, %v941
    %v943 = vpop.f32.mrf.mxu0
    %944 = vmatprep.mubr.f32.mxu0 0.0
    %945 = vmatmul.mubr.f32.gmra.mxu0 %v828
    %v946 = vpop.f32.mrf.mxu0
    %v947 = vadd.f32 0.0, %v946
    %v948 = vpop.f32.mrf.mxu0
    %949 = vmatprep.mubr.f32.mxu0 0.0
    %950 = vmatmul.mubr.f32.gmra.mxu0 %v829
    %v951 = vpop.f32.mrf.mxu0
    %v952 = vadd.f32 0.0, %v951
    %v953 = vpop.f32.mrf.mxu0
    %954 = vmatprep.mubr.f32.mxu0 0.0
    %955 = vmatmul.mubr.f32.gmra.mxu0 %v830
    %v956 = vpop.f32.mrf.mxu0
    %v957 = vadd.f32 0.0, %v956
    %v958 = vpop.f32.mrf.mxu0
    %959 = vmatprep.mubr.f32.mxu0 0.0
    %960 = vmatmul.mubr.f32.gmra.mxu0 %v831
    %v961 = vpop.f32.mrf.mxu0
    %v962 = vadd.f32 0.0, %v961
    %v963 = vpop.f32.mrf.mxu0
    %964 = vmatprep.mubr.f32.mxu0 0.0
    %965 = vmatmul.mubr.f32.gmra.mxu0 %v832
    %v966 = vpop.f32.mrf.mxu0
    %v967 = vadd.f32 0.0, %v966
    %v968 = vpop.f32.mrf.mxu0
    %969 = vmatprep.mubr.f32.mxu0 0.0
    %970 = vmatmul.mubr.f32.gmra.mxu0 %v833
    %v971 = vpop.f32.mrf.mxu0
    %v972 = vadd.f32 0.0, %v971
    %v973 = vpop.f32.mrf.mxu0
    %974 = vmatprep.mubr.f32.mxu0 0.0
    %975 = vmatmul.mubr.f32.gmra.mxu0 %v834
    %v976 = vpop.f32.mrf.mxu0
    %v977 = vadd.f32 0.0, %v976
    %v978 = vpop.f32.mrf.mxu0
    %979 = vmatprep.mubr.f32.mxu0 0.0
    %980 = vmatmul.mubr.f32.gmra.mxu0 %v835
    %v981 = vpop.f32.mrf.mxu0
    %v982 = vadd.f32 0.0, %v981
    %v983 = vpop.f32.mrf.mxu0
    %984 = vmatprep.mubr.f32.mxu0 0.0
    %985 = vmatmul.mubr.f32.gmra.mxu0 %v836
    %v986 = vpop.f32.mrf.mxu0
    %v987 = vadd.f32 0.0, %v986
    %v988 = vpop.f32.mrf.mxu0
    %989 = vmatprep.mubr.f32.mxu0 0.0
    %990 = vmatmul.mubr.f32.gmra.mxu0 %v837
    %v991 = vpop.f32.mrf.mxu0
    %v992 = vadd.f32 0.0, %v991
    %v993 = vpop.f32.mrf.mxu0
    %994 = vmatprep.mubr.f32.mxu0 0.0
    %995 = vmatmul.mubr.f32.gmra.mxu0 %v838
    %v996 = vpop.f32.mrf.mxu0
    %v997 = vadd.f32 0.0, %v996
    %v998 = vpop.f32.mrf.mxu0
    %999 = vdwg.mxu0
    %v1000 = vpack.c.bf16 %v927, %v922
    %v1001 = vpack.c.bf16 %v937, %v932
    %v1002 = vpack.c.bf16 %v947, %v942
    %v1003 = vpack.c.bf16 %v957, %v952
    %v1004 = vpack.c.bf16 %v967, %v962
    %v1005 = vpack.c.bf16 %v977, %v972
    %v1006 = vpack.c.bf16 %v987, %v982
    %v1007 = vpack.c.bf16 %v997, %v992
    %v1008 = vld [vmem:[%s8] sm:$0x1]
    %v1010 = vlaneseq
    %v1011 = vshrl.u32 %v1010, 7
    %v1012 = vsub.s32 0, %v1011
    %v1013 = vrot.slane %v1008, %v1012
    %1015 = vmatprep.subr.bf16.mxu0 0
    %1016 = vmatpush1.bf16.msra.mxu0 %v1007
    %1017 = vmatprep.subr.bf16.mxu0 0
    %1018 = vmatpush1.bf16.msra.mxu0 %v1006
    %1019 = vmatprep.subr.bf16.mxu0 0
    %1020 = vmatpush1.bf16.msra.mxu0 %v1005
    %1021 = vmatprep.subr.bf16.mxu0 0
    %1022 = vmatpush1.bf16.msra.mxu0 %v1004
    %1023 = vmatprep.subr.bf16.mxu0 0
    %1024 = vmatpush1.bf16.msra.mxu0 %v1003
    %1025 = vmatprep.subr.bf16.mxu0 0
    %1026 = vmatpush1.bf16.msra.mxu0 %v1002
    %1027 = vmatprep.subr.bf16.mxu0 0
    %1028 = vmatpush1.bf16.msra.mxu0 %v1001
    %1029 = vmatprep.subr.bf16.mxu0 0
    %1030 = vmatpush1.bf16.msra.mxu0 %v1000
    %1031 = vmatprep.subr.bf16.mxu0 0
    %1032 = vmatpush2.bf16.msra.mxu0 0
    %1033 = vmatprep.subr.bf16.mxu0 0
    %1034 = vmatpush2.bf16.msra.mxu0 0
    %1035 = vmatprep.subr.bf16.mxu0 0
    %1036 = vmatpush2.bf16.msra.mxu0 0
    %1037 = vmatprep.subr.bf16.mxu0 0
    %1038 = vmatpush2.bf16.msra.mxu0 0
    %1039 = vmatprep.subr.bf16.mxu0 0
    %1040 = vmatpush2.bf16.msra.mxu0 0
    %1041 = vmatprep.subr.bf16.mxu0 0
    %1042 = vmatpush2.bf16.msra.mxu0 0
    %1043 = vmatprep.subr.bf16.mxu0 0
    %1044 = vmatpush2.bf16.msra.mxu0 0
    %1045 = vmatprep.subr.bf16.mxu0 0
    %1046 = vmatpush2.bf16.msra.mxu0 0
    %1047 = vmatprep.mubr.bf16.mxu0 0
    %1048 = vmatmul.mubr.bf16.gmra.mxu0 %v373
    %v1049 = vpop.f32.mrf.mxu0
    %v1050 = vadd.f32 %v1013, %v1049
    %v1051 = vpop.f32.mrf.mxu0
    %v1052 = vpop.f32.mrf.mxu0
    %v1053 = vadd.f32 %v1013, %v1052
    %v1054 = vpop.f32.mrf.mxu0
    %1055 = vmatprep.mubr.bf16.mxu0 0
    %1056 = vmatmul.mubr.bf16.gmra.mxu0 %v374
    %v1057 = vpop.f32.mrf.mxu0
    %v1058 = vadd.f32 %v1013, %v1057
    %v1059 = vpop.f32.mrf.mxu0
    %v1060 = vpop.f32.mrf.mxu0
    %v1061 = vadd.f32 %v1013, %v1060
    %v1062 = vpop.f32.mrf.mxu0
    %1063 = vmatprep.mubr.bf16.mxu0 0
    %1064 = vmatmul.mubr.bf16.gmra.mxu0 %v375
    %v1065 = vpop.f32.mrf.mxu0
    %v1066 = vadd.f32 %v1013, %v1065
    %v1067 = vpop.f32.mrf.mxu0
    %v1068 = vpop.f32.mrf.mxu0
    %v1069 = vadd.f32 %v1013, %v1068
    %v1070 = vpop.f32.mrf.mxu0
    %1071 = vmatprep.mubr.bf16.mxu0 0
    %1072 = vmatmul.mubr.bf16.gmra.mxu0 %v376
    %v1073 = vpop.f32.mrf.mxu0
    %v1074 = vadd.f32 %v1013, %v1073
    %v1075 = vpop.f32.mrf.mxu0
    %v1076 = vpop.f32.mrf.mxu0
    %v1077 = vadd.f32 %v1013, %v1076
    %v1078 = vpop.f32.mrf.mxu0
    %1079 = vmatprep.mubr.bf16.mxu0 0
    %1080 = vmatmul.mubr.bf16.gmra.mxu0 %v377
    %v1081 = vpop.f32.mrf.mxu0
    %v1082 = vadd.f32 %v1013, %v1081
    %v1083 = vpop.f32.mrf.mxu0
    %v1084 = vpop.f32.mrf.mxu0
    %v1085 = vadd.f32 %v1013, %v1084
    %v1086 = vpop.f32.mrf.mxu0
    %1087 = vmatprep.mubr.bf16.mxu0 0
    %1088 = vmatmul.mubr.bf16.gmra.mxu0 %v378
    %v1089 = vpop.f32.mrf.mxu0
    %v1090 = vadd.f32 %v1013, %v1089
    %v1091 = vpop.f32.mrf.mxu0
    %v1092 = vpop.f32.mrf.mxu0
    %v1093 = vadd.f32 %v1013, %v1092
    %v1094 = vpop.f32.mrf.mxu0
    %1095 = vmatprep.mubr.bf16.mxu0 0
    %1096 = vmatmul.mubr.bf16.gmra.mxu0 %v379
    %v1097 = vpop.f32.mrf.mxu0
    %v1098 = vadd.f32 %v1013, %v1097
    %v1099 = vpop.f32.mrf.mxu0
    %v1100 = vpop.f32.mrf.mxu0
    %v1101 = vadd.f32 %v1013, %v1100
    %v1102 = vpop.f32.mrf.mxu0
    %1103 = vmatprep.mubr.bf16.mxu0 0
    %1104 = vmatmul.mubr.bf16.gmra.mxu0 %v380
    %v1105 = vpop.f32.mrf.mxu0
    %v1106 = vadd.f32 %v1013, %v1105
    %v1107 = vpop.f32.mrf.mxu0
    %v1108 = vpop.f32.mrf.mxu0
    %v1109 = vadd.f32 %v1013, %v1108
    %v1110 = vpop.f32.mrf.mxu0
    %1111 = vdwg.mxu0
    %v1112 = vmax.f32 %v1050, 0.0
    %v1113 = vmax.f32 %v1053, 0.0
    %v1114 = vmax.f32 %v1058, 0.0
    %v1115 = vmax.f32 %v1061, 0.0
    %v1116 = vmax.f32 %v1066, 0.0
    %v1117 = vmax.f32 %v1069, 0.0
    %v1118 = vmax.f32 %v1074, 0.0
    %v1119 = vmax.f32 %v1077, 0.0
    %v1120 = vmax.f32 %v1082, 0.0
    %v1121 = vmax.f32 %v1085, 0.0
    %v1122 = vmax.f32 %v1090, 0.0
    %v1123 = vmax.f32 %v1093, 0.0
    %v1124 = vmax.f32 %v1098, 0.0
    %v1125 = vmax.f32 %v1101, 0.0
    %v1126 = vmax.f32 %v1106, 0.0
    %v1127 = vmax.f32 %v1109, 0.0
    %v1128 = vpack.c.bf16 %v1113, %v1112
    %v1129 = vpack.c.bf16 %v1115, %v1114
    %v1130 = vpack.c.bf16 %v1117, %v1116
    %v1131 = vpack.c.bf16 %v1119, %v1118
    %v1132 = vpack.c.bf16 %v1121, %v1120
    %v1133 = vpack.c.bf16 %v1123, %v1122
    %v1134 = vpack.c.bf16 %v1125, %v1124
    %v1135 = vpack.c.bf16 %v1127, %v1126
    %v1136 = vld [vmem:[#allocation5] sm:$0xf]
    %1137 = vmatprep.subr.bf16.mxu0 0
    %1138 = vmatpush1.bf16.msra.mxu0 %v1135
    %1139 = vmatprep.subr.bf16.mxu0 0
    %1140 = vmatpush1.bf16.msra.mxu0 %v1134
    %1141 = vmatprep.subr.bf16.mxu0 0
    %1142 = vmatpush1.bf16.msra.mxu0 %v1133
    %1143 = vmatprep.subr.bf16.mxu0 0
    %1144 = vmatpush1.bf16.msra.mxu0 %v1132
    %1145 = vmatprep.subr.bf16.mxu0 0
    %1146 = vmatpush1.bf16.msra.mxu0 %v1131
    %1147 = vmatprep.subr.bf16.mxu0 0
    %1148 = vmatpush1.bf16.msra.mxu0 %v1130
    %1149 = vmatprep.subr.bf16.mxu0 0
    %1150 = vmatpush1.bf16.msra.mxu0 %v1129
    %1151 = vmatprep.subr.bf16.mxu0 0
    %1152 = vmatpush1.bf16.msra.mxu0 %v1128
    %1153 = vmatprep.subr.bf16.mxu0 0
    %1154 = vmatpush2.bf16.msra.mxu0 0
    %1155 = vmatprep.subr.bf16.mxu0 0
    %1156 = vmatpush2.bf16.msra.mxu0 0
    %1157 = vmatprep.subr.bf16.mxu0 0
    %1158 = vmatpush2.bf16.msra.mxu0 0
    %1159 = vmatprep.subr.bf16.mxu0 0
    %1160 = vmatpush2.bf16.msra.mxu0 0
    %1161 = vmatprep.subr.bf16.mxu0 0
    %1162 = vmatpush2.bf16.msra.mxu0 0
    %1163 = vmatprep.subr.bf16.mxu0 0
    %1164 = vmatpush2.bf16.msra.mxu0 0
    %1165 = vmatprep.subr.bf16.mxu0 0
    %1166 = vmatpush2.bf16.msra.mxu0 0
    %1167 = vmatprep.subr.bf16.mxu0 0
    %1168 = vmatpush2.bf16.msra.mxu0 0
    %1169 = vmatprep.mubr.bf16.mxu0 0
    %1170 = vmatmul.mubr.bf16.gmra.mxu0 %v1136
    %v1171 = vpop.f32.mrf.mxu0
    %v1172 = vadd.f32 0.0, %v1171
    %v1173 = vpop.f32.mrf.mxu0
    %v1174 = vpop.f32.mrf.mxu0
    %v1175 = vpop.f32.mrf.mxu0
    %1176 = vdwg.mxu0
    %v1177 = vld [vmem:[#allocation13] sm:$0xff]
    %v1178 = vld [vmem:[#allocation13 + $0x8] sm:$0xff]
    %v1179 = vld [vmem:[#allocation13 + $0x10] sm:$0xff]
    %v1180 = vld [vmem:[#allocation13 + $0x18] sm:$0xff]
    %v1181 = vld [vmem:[#allocation13 + $0x20] sm:$0xff]
    %v1182 = vld [vmem:[#allocation13 + $0x28] sm:$0xff]
    %v1183 = vld [vmem:[#allocation13 + $0x30] sm:$0xff]
    %v1184 = vld [vmem:[#allocation13 + $0x38] sm:$0xff]
    %v1185 = vld [vmem:[#allocation13 + $0x40] sm:$0xff]
    %v1186 = vld [vmem:[#allocation13 + $0x48] sm:$0xff]
    %v1187 = vld [vmem:[#allocation13 + $0x50] sm:$0xff]
    %v1188 = vld [vmem:[#allocation13 + $0x58] sm:$0xff]
    %v1189 = vld [vmem:[#allocation13 + $0x60] sm:$0xff]
    %v1190 = vld [vmem:[#allocation13 + $0x68] sm:$0xff]
    %v1191 = vld [vmem:[#allocation13 + $0x70] sm:$0xff]
    %v1192 = vld [vmem:[#allocation13 + $0x78] sm:$0xff]
    %v1193 = vld [vmem:[%s10] sm:$0x1]
    %v1195 = vlaneseq
    %v1196 = vshrl.u32 %v1195, 7
    %v1197 = vsub.s32 0, %v1196
    %v1198 = vrot.slane %v1193, %v1197
    %1200 = vmatprep.subr.mxu0 0.0
    %1201 = vmatpush1.msra.mxu0 %v1192
    %1202 = vmatprep.subr.mxu0 0.0
    %1203 = vmatpush1.msra.mxu0 %v1191
    %1204 = vmatprep.subr.mxu0 0.0
    %1205 = vmatpush1.msra.mxu0 %v1190
    %1206 = vmatprep.subr.mxu0 0.0
    %1207 = vmatpush1.msra.mxu0 %v1189
    %1208 = vmatprep.subr.mxu0 0.0
    %1209 = vmatpush1.msra.mxu0 %v1188
    %1210 = vmatprep.subr.mxu0 0.0
    %1211 = vmatpush1.msra.mxu0 %v1187
    %1212 = vmatprep.subr.mxu0 0.0
    %1213 = vmatpush1.msra.mxu0 %v1186
    %1214 = vmatprep.subr.mxu0 0.0
    %1215 = vmatpush1.msra.mxu0 %v1185
    %1216 = vmatprep.subr.mxu0 0.0
    %1217 = vmatpush1.msra.mxu0 %v1184
    %1218 = vmatprep.subr.mxu0 0.0
    %1219 = vmatpush1.msra.mxu0 %v1183
    %1220 = vmatprep.subr.mxu0 0.0
    %1221 = vmatpush1.msra.mxu0 %v1182
    %1222 = vmatprep.subr.mxu0 0.0
    %1223 = vmatpush1.msra.mxu0 %v1181
    %1224 = vmatprep.subr.mxu0 0.0
    %1225 = vmatpush1.msra.mxu0 %v1180
    %1226 = vmatprep.subr.mxu0 0.0
    %1227 = vmatpush1.msra.mxu0 %v1179
    %1228 = vmatprep.subr.mxu0 0.0
    %1229 = vmatpush1.msra.mxu0 %v1178
    %1230 = vmatprep.subr.mxu0 0.0
    %1231 = vmatpush1.msra.mxu0 %v1177
    %1232 = vmatprep.subr.mxu0 0.0
    %1233 = vmatpush2.msra.mxu0 0.0
    %1234 = vmatprep.subr.mxu0 0.0
    %1235 = vmatpush2.msra.mxu0 0.0
    %1236 = vmatprep.subr.mxu0 0.0
    %1237 = vmatpush2.msra.mxu0 0.0
    %1238 = vmatprep.subr.mxu0 0.0
    %1239 = vmatpush2.msra.mxu0 0.0
    %1240 = vmatprep.subr.mxu0 0.0
    %1241 = vmatpush2.msra.mxu0 0.0
    %1242 = vmatprep.subr.mxu0 0.0
    %1243 = vmatpush2.msra.mxu0 0.0
    %1244 = vmatprep.subr.mxu0 0.0
    %1245 = vmatpush2.msra.mxu0 0.0
    %1246 = vmatprep.subr.mxu0 0.0
    %1247 = vmatpush2.msra.mxu0 0.0
    %1248 = vmatprep.subr.mxu0 0.0
    %1249 = vmatpush2.msra.mxu0 0.0
    %1250 = vmatprep.subr.mxu0 0.0
    %1251 = vmatpush2.msra.mxu0 0.0
    %1252 = vmatprep.subr.mxu0 0.0
    %1253 = vmatpush2.msra.mxu0 0.0
    %1254 = vmatprep.subr.mxu0 0.0
    %1255 = vmatpush2.msra.mxu0 0.0
    %1256 = vmatprep.subr.mxu0 0.0
    %1257 = vmatpush2.msra.mxu0 0.0
    %1258 = vmatprep.subr.mxu0 0.0
    %1259 = vmatpush2.msra.mxu0 0.0
    %1260 = vmatprep.subr.mxu0 0.0
    %1261 = vmatpush2.msra.mxu0 0.0
    %1262 = vmatprep.subr.mxu0 0.0
    %1263 = vmatpush2.msra.mxu0 0.0
    %1264 = vmatprep.mubr.f32.mxu0 0.0
    %1265 = vmatmul.mubr.f32.gmra.mxu0 %v1172
    %v1266 = vpop.f32.mrf.mxu0
    %v1267 = vadd.f32 %v1198, %v1266
    %v1268 = vpop.f32.mrf.mxu0
    %1269 = vdwg.mxu0
    %1270 = vst [vmem:[#allocation14] sm:$0xff] %v1267
    // Predicated region
    $region74: #{tpu_custom_call.1} parent=1 // pred_check
      _
    $region75: #{tpu_custom_call.1} parent=1 // pred_check_branch
      %1272 = sbr.rel (0) target = $region77
    $region76: #{tpu_custom_call.1} parent=1 // pred_region
      %s1274 = ssub.s32 128, 128
      %1275 = vsyncadd [#allocation4], %s1274
      %s1277 = sshll.u32 [#allocation14], 4
      %s1278 = int_to_ptr.vmem [resolvable:$true] %s1277
      %1280 = dma.vmem_to_hbm [thread:$0]  %s1278, 128, %s11, [#allocation4]
    $region77: #{tpu_custom_call.1} parent=1 // pred_fallthru
      _
    // Predicated region
    $region78: #{tpu_custom_call.1} parent=1 // pred_check
      _
    $region79: #{tpu_custom_call.1} parent=1 // pred_check_branch
      %1282 = sbr.rel (0) target = $region81
    $region80: #{tpu_custom_call.1} parent=1 // pred_region
      %1283 = dma.done [#allocation4], 128
    $region81: #{tpu_custom_call.1} parent=1 // pred_fallthru
      _
    %1284 = vsyncpa [#allocation3], 1
    %1285 = vsyncpa [#allocation6], 1
    %1286 = vsyncpa [#allocation9], 1
    %1287 = vsyncpa [#allocation12], 1
    %1288 = vsyncpa [#allocation4], 1

</llo_original>
